<compile_context>
chip_gen: v7x
topology: tpu7x:2x2x1
jax: 0.10.0
libtpu: 0.0.40
codegen_flags: <defaults>
</compile_context>

<pallas_src>
import math
from functools import partial

import jax
import jax.numpy as jnp
from jax.experimental import pallas as pl
from jax.experimental.pallas import tpu as pltpu


# ----------------------------- in-kernel helpers -----------------------------

def _layer_norm(x, gamma, beta, eps=1e-5):
    mu = jnp.mean(x, axis=-1, keepdims=True)
    var = jnp.mean(jnp.square(x - mu), axis=-1, keepdims=True)
    return (x - mu) * jax.lax.rsqrt(var + eps) * gamma + beta


def _erf(x):
    # Abramowitz & Stegun 7.1.26 rational approximation, |err| ~ 1e-5 with the
    # approx reciprocal (divide moved off the VPU onto the EUP).
    a1, a2, a3, a4, a5 = 0.254829592, -0.284496736, 1.421413741, -1.453152027, 1.061405429
    p = 0.3275911
    z = jnp.abs(x)
    t = pl.reciprocal(1.0 + p * z, approx=True)
    poly = ((((a5 * t + a4) * t + a3) * t + a2) * t + a1) * t
    y = 1.0 - poly * jnp.exp(-z * z)
    return jnp.where(x < 0, -y, y)


def _gelu_exact(x):
    # PyTorch nn.GELU() default: 0.5*x*(1+erf(x/sqrt(2)))
    return 0.5 * x * (1.0 + _erf(x * (1.0 / math.sqrt(2.0))))


# --------------------------------- kernel ------------------------------------

def _mha_kernel(n_heads, d_head,
                x_ref, rope_ref, ln_ref, bias_ref, bqkv_ref,
                wqkv_ref, wqkv_rot_ref, wo3_ref, w1_ref, w2_ref,
                out_ref, acc_ref):
    x = x_ref[0].astype(jnp.float32)                 # (T, D)
    T, D = x.shape
    d_ff = w1_ref.shape[1]

    # ---- unpack small params (packed loads, static slices) ----
    lnp = ln_ref[...]                                # (4, D): [g1, be1, g2, be2]
    g1, be1, g2, be2 = lnp[0:1], lnp[1:2], lnp[2:3], lnp[3:4]
    bias = bias_ref[...]                             # (3, W): [b_o, b_1, b_2] padded
    b_o = bias[0:1, :D]
    b_1 = bias[1:2, :d_ff]
    b_2 = bias[2:3, :D]
    rp = rope_ref[...]                               # (2, T, D): [cos_f, sin_g]
    cos_f = rp[0]
    sin_g = rp[1]

    # ---- norm1 + RoPE operands (the rotate-by-half is folded into wqkv_rot) ----
    xn = _layer_norm(x, g1, be1)
    a_cos = (xn * cos_f).astype(wqkv_ref.dtype)      # bf16 MXU operands
    a_sin = (xn * sin_g).astype(wqkv_ref.dtype)

    # ---- per-head attention, accumulated into a VMEM f32 scratch ----
    acc_ref[...] = jnp.zeros_like(acc_ref)

    def head_body(h, carry):
        # fused per-head [q | k | v] projection; RoPE and 1/sqrt(d_head) are already
        # folded into the weights/bias at init.
        qkv = (jnp.dot(a_cos, wqkv_ref[h], preferred_element_type=jnp.float32)
               + jnp.dot(a_sin, wqkv_rot_ref[h], preferred_element_type=jnp.float32)
               + bqkv_ref[h])                                          # (T, 3*dh) f32
        qh = qkv[:, :d_head].astype(jnp.bfloat16)
        kh = qkv[:, d_head:2 * d_head].astype(jnp.bfloat16)
        vh = qkv[:, 2 * d_head:3 * d_head].astype(jnp.bfloat16)
        # q @ k^T without materializing a transpose (bf16 in, f32 accumulate)
        s = jax.lax.dot_general(qh, kh, (((1,), (1,)), ((), ())),
                                preferred_element_type=jnp.float32)    # (T, T)
        s = s - jnp.max(s, axis=-1, keepdims=True)
        p = jnp.exp(s)
        p = p * pl.reciprocal(jnp.sum(p, axis=-1, keepdims=True), approx=True)
        ctx = jnp.dot(p.astype(jnp.bfloat16), vh,
                      preferred_element_type=jnp.float32)              # (T, dh)
        # head-concat folded into out_proj: accumulate ctx_h @ Wo[h]
        acc_ref[...] += jnp.dot(ctx.astype(jnp.bfloat16), wo3_ref[h],
                                preferred_element_type=jnp.float32)    # (T, D)
        return carry

    jax.lax.fori_loop(0, n_heads, head_body, 0, unroll=True)

    h_out = acc_ref[...] + b_o

    # ---- residuals (reference: x = x + h; x = x + ff(x + h) => FFN sees x0 + 2h) ----
    res1 = x + h_out
    ff_in = res1 + h_out

    # ---- FFN: LayerNorm -> Linear -> GELU -> Linear ----
    yn = _layer_norm(ff_in, g2, be2)
    f = jnp.dot(yn.astype(w1_ref.dtype), w1_ref[...],
                preferred_element_type=jnp.float32) + b_1
    f = _gelu_exact(f)
    ffo = jnp.dot(f.astype(w2_ref.dtype), w2_ref[...],
                  preferred_element_type=jnp.float32) + b_2

    out_ref[0] = (res1 + ffo).astype(out_ref.dtype)


# -------------------------------- wrapper -------------------------------------

def _rope_pack(T, D, base=10000.0):
    half = D // 2
    inv_freq = 1.0 / (base ** (jnp.arange(half, dtype=jnp.float32) / half))
    ang = jnp.arange(T, dtype=jnp.float32)[:, None] * inv_freq[None, :]   # (T, half)
    cos = jnp.cos(ang)
    sin = jnp.sin(ang)
    cos_f = jnp.concatenate([cos, cos], axis=-1)          # (T, D)
    # Sign pattern matching the weight-folded rotation: x_rot-term = (xn*sin_g) @ W_rot
    sin_g = jnp.concatenate([sin, -sin], axis=-1)          # (T, D)
    return jnp.stack([cos_f, sin_g], axis=0)               # (2, T, D)


def _full_spec(a):
    n = a.ndim
    return pl.BlockSpec(a.shape, lambda b, n=n: (0,) * n)


def mha_block(x, params, *, n_heads):
    B, T, D = x.shape
    d_head = D // n_heads
    ln_pack, bias_pack, bqkv, wqkv, wqkv_rot, wo3, w1, w2 = params
    rope = _rope_pack(T, D)

    inputs = (x, rope, ln_pack, bias_pack, bqkv, wqkv, wqkv_rot, wo3, w1, w2)
    in_specs = [pl.BlockSpec((1, T, D), lambda b: (b, 0, 0))]
    in_specs += [_full_spec(a) for a in inputs[1:]]

    return pl.pallas_call(
        partial(_mha_kernel, n_heads, d_head),
        grid=(B,),
        in_specs=in_specs,
        out_specs=pl.BlockSpec((1, T, D), lambda b: (b, 0, 0)),
        out_shape=jax.ShapeDtypeStruct((B, T, D), x.dtype),
        scratch_shapes=[pltpu.VMEM((T, D), jnp.float32)],   # attention accumulator
        compiler_params=pltpu.CompilerParams(dimension_semantics=("parallel",)),
    )(*inputs)


def init_params(key, D, ff_mult, n_heads):
    """Deterministic synthetic params packed into kernel-friendly layouts."""
    d_head = D // n_heads
    d_ff = D * ff_mult
    half = D // 2

    def lin(k, fan_in, fan_out):
        k1, k2 = jax.random.split(k)
        bound = 1.0 / math.sqrt(fan_in)              # PyTorch default Linear init range
        w = jax.random.uniform(k1, (fan_in, fan_out), jnp.float32, -bound, bound)
        b = jax.random.uniform(k2, (fan_out,), jnp.float32, -bound, bound)
        return w, b

    ks = jax.random.split(key, 6)
    wq, bq = lin(ks[0], D, D)
    wk, bk = lin(ks[1], D, D)
    wv, bv = lin(ks[2], D, D)
    wo, bo = lin(ks[3], D, D)
    w1, b1 = lin(ks[4], D, d_ff)
    w2, b2 = lin(ks[5], d_ff, D)

    # Fold the attention scale into the Q weights and bias.
    scale = 1.0 / math.sqrt(d_head)
    wq = wq * scale
    bq = bq * scale

    # LayerNorm params: rows [gamma1, beta1, gamma2, beta2]
    ln_pack = jnp.stack([jnp.ones((D,), jnp.float32), jnp.zeros((D,), jnp.float32),
                         jnp.ones((D,), jnp.float32), jnp.zeros((D,), jnp.float32)], axis=0)

    # Non-QKV biases packed lane-dense into a single (3, W) block.
    W = max(D, d_ff)
    bias_pack = jnp.zeros((3, W), jnp.float32)
    bias_pack = bias_pack.at[0, :D].set(bo)
    bias_pack = bias_pack.at[1, :d_ff].set(b1)
    bias_pack = bias_pack.at[2, :D].set(b2)

    # Per-head fused [q | k | v] projection weights, head on the leading axis so the
    # kernel selects them with leading-axis ref indexing:  (H, D, 3*d_head).
    def heads(w):  # (D, D) -> (H, D, d_head), head h = output columns h*dh:(h+1)*dh
        return w.reshape(D, n_heads, d_head).transpose(1, 0, 2)

    wqkv = jnp.concatenate([heads(wq), heads(wk), heads(wv)], axis=2)   # (H, D, 3dh)
    # RoPE rotate-by-half folded into a row-rolled (input-dim) copy of the weights.
    wqkv_rot = jnp.roll(wqkv, half, axis=1)                             # (H, D, 3dh)

    # Per-head QKV bias: (H, 1, 3*d_head)
    bqkv = jnp.concatenate([bq.reshape(n_heads, d_head),
                            bk.reshape(n_heads, d_head),
                            bv.reshape(n_heads, d_head)], axis=1)[:, None, :]

    # Head-major out_proj weight (head concat folded into the accumulation).
    wo3 = wo.reshape(n_heads, d_head, D)

    return (ln_pack, bias_pack, bqkv,
            wqkv.astype(jnp.bfloat16), wqkv_rot.astype(jnp.bfloat16),
            wo3.astype(jnp.bfloat16),
            w1.astype(jnp.bfloat16), w2.astype(jnp.bfloat16))


if __name__ == "__main__":
    B, T, D, H, FF_MULT = 2, 8, 32, 4, 4
    key = jax.random.PRNGKey(0)
    kx, kp = jax.random.split(key)
    x = jax.random.normal(kx, (B, T, D), jnp.float32)
    params = init_params(kp, D, FF_MULT, H)

    out = mha_block(x, params, n_heads=H)
    out = jax.block_until_ready(out)
    assert out.shape == (B, T, D) and out.dtype == jnp.float32
    assert bool(jnp.all(jnp.isfinite(out)))
    print("KERNEL_OK")
</pallas_src>

<mosaic_0001>
module attributes {stable_mosaic.version = 11 : i64} {
  func.func @_mha_kernel(%arg0: i32, %arg1: memref<1x8x32xf32, #tpu.memory_space<vmem>>, %arg2: memref<2x8x32xf32, #tpu.memory_space<vmem>>, %arg3: memref<4x32xf32, #tpu.memory_space<vmem>>, %arg4: memref<3x128xf32, #tpu.memory_space<vmem>>, %arg5: memref<4x1x24xf32, #tpu.memory_space<vmem>>, %arg6: memref<4x32x24xbf16, #tpu.memory_space<vmem>>, %arg7: memref<4x32x24xbf16, #tpu.memory_space<vmem>>, %arg8: memref<4x8x32xbf16, #tpu.memory_space<vmem>>, %arg9: memref<32x128xbf16, #tpu.memory_space<vmem>>, %arg10: memref<128x32xbf16, #tpu.memory_space<vmem>>, %arg11: memref<1x8x32xf32, #tpu.memory_space<vmem>>, %arg12: memref<8x32xf32, #tpu.memory_space<vmem>>) attributes {dimension_semantics = [#tpu.dimension_semantics<parallel>], iteration_bounds = array<i64: 2>, scalar_prefetch = 0 : i64, scratch_operands = 1 : i64, tpu.core_type = #tpu.core_type<tc>, window_params = [{transform_indices = @transform_0, window_bounds = array<i64: 1, 8, 32>}, {pipeline_mode = #tpu.pipeline_mode<synchronous>, transform_indices = @transform_1, window_bounds = array<i64: 2, 8, 32>}, {pipeline_mode = #tpu.pipeline_mode<synchronous>, transform_indices = @transform_2, window_bounds = array<i64: 4, 32>}, {pipeline_mode = #tpu.pipeline_mode<synchronous>, transform_indices = @transform_3, window_bounds = array<i64: 3, 128>}, {pipeline_mode = #tpu.pipeline_mode<synchronous>, transform_indices = @transform_4, window_bounds = array<i64: 4, 1, 24>}, {pipeline_mode = #tpu.pipeline_mode<synchronous>, transform_indices = @transform_5, window_bounds = array<i64: 4, 32, 24>}, {pipeline_mode = #tpu.pipeline_mode<synchronous>, transform_indices = @transform_6, window_bounds = array<i64: 4, 32, 24>}, {pipeline_mode = #tpu.pipeline_mode<synchronous>, transform_indices = @transform_7, window_bounds = array<i64: 4, 8, 32>}, {pipeline_mode = #tpu.pipeline_mode<synchronous>, transform_indices = @transform_8, window_bounds = array<i64: 32, 128>}, {pipeline_mode = #tpu.pipeline_mode<synchronous>, transform_indices = @transform_9, window_bounds = array<i64: 128, 32>}, {transform_indices = @transform_10, window_bounds = array<i64: 1, 8, 32>}]} {
    %c0 = arith.constant 0 : index
    %c0_0 = arith.constant 0 : index
    %c0_1 = arith.constant 0 : index
    %0 = vector.load %arg1[%c0, %c0_0, %c0_1] : memref<1x8x32xf32, #tpu.memory_space<vmem>>, vector<1x8x32xf32>
    %1 = vector.shape_cast %0 : vector<1x8x32xf32> to vector<8x32xf32>
    %c0_2 = arith.constant 0 : index
    %c0_3 = arith.constant 0 : index
    %2 = vector.load %arg3[%c0_2, %c0_3] : memref<4x32xf32, #tpu.memory_space<vmem>>, vector<4x32xf32>
    %3 = vector.extract_strided_slice %2 {offsets = [0, 0], sizes = [1, 32], strides = [1, 1]} : vector<4x32xf32> to vector<1x32xf32>
    %4 = vector.extract_strided_slice %2 {offsets = [1, 0], sizes = [1, 32], strides = [1, 1]} : vector<4x32xf32> to vector<1x32xf32>
    %5 = vector.extract_strided_slice %2 {offsets = [2, 0], sizes = [1, 32], strides = [1, 1]} : vector<4x32xf32> to vector<1x32xf32>
    %6 = vector.extract_strided_slice %2 {offsets = [3, 0], sizes = [1, 32], strides = [1, 1]} : vector<4x32xf32> to vector<1x32xf32>
    %c0_4 = arith.constant 0 : index
    %c0_5 = arith.constant 0 : index
    %7 = vector.load %arg4[%c0_4, %c0_5] : memref<3x128xf32, #tpu.memory_space<vmem>>, vector<3x128xf32>
    %8 = vector.extract_strided_slice %7 {offsets = [0, 0], sizes = [1, 32], strides = [1, 1]} : vector<3x128xf32> to vector<1x32xf32>
    %9 = vector.extract_strided_slice %7 {offsets = [1, 0], sizes = [1, 128], strides = [1, 1]} : vector<3x128xf32> to vector<1x128xf32>
    %10 = vector.extract_strided_slice %7 {offsets = [2, 0], sizes = [1, 32], strides = [1, 1]} : vector<3x128xf32> to vector<1x32xf32>
    %c0_6 = arith.constant 0 : index
    %c0_7 = arith.constant 0 : index
    %c0_8 = arith.constant 0 : index
    %11 = vector.load %arg2[%c0_6, %c0_7, %c0_8] : memref<2x8x32xf32, #tpu.memory_space<vmem>>, vector<2x8x32xf32>
    %12 = vector.extract_strided_slice %11 {offsets = [0, 0, 0], sizes = [1, 8, 32], strides = [1, 1, 1]} : vector<2x8x32xf32> to vector<1x8x32xf32>
    %13 = vector.shape_cast %12 : vector<1x8x32xf32> to vector<8x32xf32>
    %14 = vector.extract_strided_slice %11 {offsets = [1, 0, 0], sizes = [1, 8, 32], strides = [1, 1, 1]} : vector<2x8x32xf32> to vector<1x8x32xf32>
    %15 = vector.shape_cast %14 : vector<1x8x32xf32> to vector<8x32xf32>
    %cst = arith.constant dense<0.000000e+00> : vector<8xf32>
    %16 = vector.multi_reduction <add>, %1, %cst [1] : vector<8x32xf32> to vector<8xf32>
    %17 = vector.shape_cast %16 : vector<8xf32> to vector<8x1xf32>
    %cst_9 = arith.constant 3.200000e+01 : f32
    %18 = vector.broadcast %cst_9 : f32 to vector<8x1xf32>
    %19 = arith.divf %17, %18 : vector<8x1xf32>
    %20 = vector.broadcast %19 : vector<8x1xf32> to vector<8x32xf32>
    %21 = arith.subf %1, %20 : vector<8x32xf32>
    %22 = arith.mulf %21, %21 : vector<8x32xf32>
    %cst_10 = arith.constant dense<0.000000e+00> : vector<8xf32>
    %23 = vector.multi_reduction <add>, %22, %cst_10 [1] : vector<8x32xf32> to vector<8xf32>
    %24 = vector.shape_cast %23 : vector<8xf32> to vector<8x1xf32>
    %cst_11 = arith.constant 3.200000e+01 : f32
    %25 = vector.broadcast %cst_11 : f32 to vector<8x1xf32>
    %26 = arith.divf %24, %25 : vector<8x1xf32>
    %27 = vector.broadcast %19 : vector<8x1xf32> to vector<8x32xf32>
    %28 = arith.subf %1, %27 : vector<8x32xf32>
    %cst_12 = arith.constant 9.99999974E-6 : f32
    %29 = vector.broadcast %cst_12 : f32 to vector<8x1xf32>
    %30 = arith.addf %26, %29 : vector<8x1xf32>
    %31 = math.rsqrt %30 : vector<8x1xf32>
    %32 = vector.broadcast %31 : vector<8x1xf32> to vector<8x32xf32>
    %33 = arith.mulf %28, %32 : vector<8x32xf32>
    %34 = vector.broadcast %3 : vector<1x32xf32> to vector<8x32xf32>
    %35 = arith.mulf %33, %34 : vector<8x32xf32>
    %36 = vector.broadcast %4 : vector<1x32xf32> to vector<8x32xf32>
    %37 = arith.addf %35, %36 : vector<8x32xf32>
    %38 = arith.mulf %37, %13 : vector<8x32xf32>
    %39 = arith.truncf %38 : vector<8x32xf32> to vector<8x32xbf16>
    %40 = arith.mulf %37, %15 : vector<8x32xf32>
    %41 = arith.truncf %40 : vector<8x32xf32> to vector<8x32xbf16>
    %cst_13 = arith.constant 0.000000e+00 : f32
    %42 = vector.broadcast %cst_13 : f32 to vector<8x32xf32>
    %c0_14 = arith.constant 0 : index
    %c0_15 = arith.constant 0 : index
    %43 = vector.load %arg12[%c0_14, %c0_15] : memref<8x32xf32, #tpu.memory_space<vmem>>, vector<8x32xf32>
    tpu.vector_store %arg12[%c0_14, %c0_15], %42 {strides = array<i32>} : memref<8x32xf32, #tpu.memory_space<vmem>>, vector<8x32xf32>,
    %c0_i32 = arith.constant 0 : i32
    %44 = arith.index_cast %c0_i32 : i32 to index
    %c0_16 = arith.constant 0 : index
    %c0_17 = arith.constant 0 : index
    %45 = vector.load %arg6[%44, %c0_16, %c0_17] : memref<4x32x24xbf16, #tpu.memory_space<vmem>>, vector<1x32x24xbf16>
    %46 = vector.shape_cast %45 : vector<1x32x24xbf16> to vector<32x24xbf16>
    %cst_18 = arith.constant dense<0.000000e+00> : vector<8x24xf32>
    %47 = tpu.matmul %39, %46, %cst_18 {dimension_numbers = #tpu.dot_dimension_numbers<[1], [0], [0], [1], [0, 0, 1, 1], [], []>} : vector<8x32xbf16>, vector<32x24xbf16>, vector<8x24xf32> -> vector<8x24xf32>
    %48 = arith.index_cast %c0_i32 : i32 to index
    %c0_19 = arith.constant 0 : index
    %c0_20 = arith.constant 0 : index
    %49 = vector.load %arg7[%48, %c0_19, %c0_20] : memref<4x32x24xbf16, #tpu.memory_space<vmem>>, vector<1x32x24xbf16>
    %50 = vector.shape_cast %49 : vector<1x32x24xbf16> to vector<32x24xbf16>
    %cst_21 = arith.constant dense<0.000000e+00> : vector<8x24xf32>
    %51 = tpu.matmul %41, %50, %cst_21 {dimension_numbers = #tpu.dot_dimension_numbers<[1], [0], [0], [1], [0, 0, 1, 1], [], []>} : vector<8x32xbf16>, vector<32x24xbf16>, vector<8x24xf32> -> vector<8x24xf32>
    %52 = arith.addf %47, %51 : vector<8x24xf32>
    %53 = arith.index_cast %c0_i32 : i32 to index
    %c0_22 = arith.constant 0 : index
    %c0_23 = arith.constant 0 : index
    %54 = vector.load %arg5[%53, %c0_22, %c0_23] : memref<4x1x24xf32, #tpu.memory_space<vmem>>, vector<1x1x24xf32>
    %55 = vector.shape_cast %54 : vector<1x1x24xf32> to vector<1x24xf32>
    %56 = vector.broadcast %55 : vector<1x24xf32> to vector<8x24xf32>
    %57 = arith.addf %52, %56 : vector<8x24xf32>
    %58 = vector.extract_strided_slice %57 {offsets = [0, 0], sizes = [8, 8], strides = [1, 1]} : vector<8x24xf32> to vector<8x8xf32>
    %59 = arith.truncf %58 : vector<8x8xf32> to vector<8x8xbf16>
    %60 = vector.extract_strided_slice %57 {offsets = [0, 8], sizes = [8, 8], strides = [1, 1]} : vector<8x24xf32> to vector<8x8xf32>
    %61 = arith.truncf %60 : vector<8x8xf32> to vector<8x8xbf16>
    %62 = vector.extract_strided_slice %57 {offsets = [0, 16], sizes = [8, 8], strides = [1, 1]} : vector<8x24xf32> to vector<8x8xf32>
    %63 = arith.truncf %62 : vector<8x8xf32> to vector<8x8xbf16>
    %cst_24 = arith.constant dense<0.000000e+00> : vector<8x8xf32>
    %64 = tpu.matmul %59, %61, %cst_24 {dimension_numbers = #tpu.dot_dimension_numbers<[1], [1], [0], [0], [0, 0, 1, 0], [], []>} : vector<8x8xbf16>, vector<8x8xbf16>, vector<8x8xf32> -> vector<8x8xf32>
    %cst_25 = arith.constant dense<0xFF800000> : vector<8xf32>
    %65 = vector.multi_reduction <maximumf>, %64, %cst_25 [1] : vector<8x8xf32> to vector<8xf32>
    %66 = vector.shape_cast %65 : vector<8xf32> to vector<8x1xf32>
    %67 = vector.broadcast %66 : vector<8x1xf32> to vector<8x8xf32>
    %68 = arith.subf %64, %67 : vector<8x8xf32>
    %69 = math.exp %68 : vector<8x8xf32>
    %cst_26 = arith.constant dense<0.000000e+00> : vector<8xf32>
    %70 = vector.multi_reduction <add>, %69, %cst_26 [1] : vector<8x8xf32> to vector<8xf32>
    %71 = vector.shape_cast %70 : vector<8xf32> to vector<8x1xf32>
    %72 = tpu.reciprocal %71 {approx = true} : vector<8x1xf32> -> vector<8x1xf32>
    %73 = vector.broadcast %72 : vector<8x1xf32> to vector<8x8xf32>
    %74 = arith.mulf %69, %73 : vector<8x8xf32>
    %75 = arith.truncf %74 : vector<8x8xf32> to vector<8x8xbf16>
    %cst_27 = arith.constant dense<0.000000e+00> : vector<8x8xf32>
    %76 = tpu.matmul %75, %63, %cst_27 {dimension_numbers = #tpu.dot_dimension_numbers<[1], [0], [0], [1], [0, 0, 1, 1], [], []>} : vector<8x8xbf16>, vector<8x8xbf16>, vector<8x8xf32> -> vector<8x8xf32>
    %c0_28 = arith.constant 0 : index
    %c0_29 = arith.constant 0 : index
    %77 = vector.load %arg12[%c0_28, %c0_29] : memref<8x32xf32, #tpu.memory_space<vmem>>, vector<8x32xf32>
    %78 = arith.truncf %76 : vector<8x8xf32> to vector<8x8xbf16>
    %79 = arith.index_cast %c0_i32 : i32 to index
    %c0_30 = arith.constant 0 : index
    %c0_31 = arith.constant 0 : index
    %80 = vector.load %arg8[%79, %c0_30, %c0_31] : memref<4x8x32xbf16, #tpu.memory_space<vmem>>, vector<1x8x32xbf16>
    %81 = vector.shape_cast %80 : vector<1x8x32xbf16> to vector<8x32xbf16>
    %cst_32 = arith.constant dense<0.000000e+00> : vector<8x32xf32>
    %82 = tpu.matmul %78, %81, %cst_32 {dimension_numbers = #tpu.dot_dimension_numbers<[1], [0], [0], [1], [0, 0, 1, 1], [], []>} : vector<8x8xbf16>, vector<8x32xbf16>, vector<8x32xf32> -> vector<8x32xf32>
    %83 = arith.addf %77, %82 : vector<8x32xf32>
    %c0_33 = arith.constant 0 : index
    %c0_34 = arith.constant 0 : index
    %84 = vector.load %arg12[%c0_33, %c0_34] : memref<8x32xf32, #tpu.memory_space<vmem>>, vector<8x32xf32>
    tpu.vector_store %arg12[%c0_33, %c0_34], %83 {strides = array<i32>} : memref<8x32xf32, #tpu.memory_space<vmem>>, vector<8x32xf32>,
    %c1_i32 = arith.constant 1 : i32
    %85 = arith.index_cast %c1_i32 : i32 to index
    %c0_35 = arith.constant 0 : index
    %c0_36 = arith.constant 0 : index
    %86 = vector.load %arg6[%85, %c0_35, %c0_36] : memref<4x32x24xbf16, #tpu.memory_space<vmem>>, vector<1x32x24xbf16>
    %87 = vector.shape_cast %86 : vector<1x32x24xbf16> to vector<32x24xbf16>
    %cst_37 = arith.constant dense<0.000000e+00> : vector<8x24xf32>
    %88 = tpu.matmul %39, %87, %cst_37 {dimension_numbers = #tpu.dot_dimension_numbers<[1], [0], [0], [1], [0, 0, 1, 1], [], []>} : vector<8x32xbf16>, vector<32x24xbf16>, vector<8x24xf32> -> vector<8x24xf32>
    %89 = arith.index_cast %c1_i32 : i32 to index
    %c0_38 = arith.constant 0 : index
    %c0_39 = arith.constant 0 : index
    %90 = vector.load %arg7[%89, %c0_38, %c0_39] : memref<4x32x24xbf16, #tpu.memory_space<vmem>>, vector<1x32x24xbf16>
    %91 = vector.shape_cast %90 : vector<1x32x24xbf16> to vector<32x24xbf16>
    %cst_40 = arith.constant dense<0.000000e+00> : vector<8x24xf32>
    %92 = tpu.matmul %41, %91, %cst_40 {dimension_numbers = #tpu.dot_dimension_numbers<[1], [0], [0], [1], [0, 0, 1, 1], [], []>} : vector<8x32xbf16>, vector<32x24xbf16>, vector<8x24xf32> -> vector<8x24xf32>
    %93 = arith.addf %88, %92 : vector<8x24xf32>
    %94 = arith.index_cast %c1_i32 : i32 to index
    %c0_41 = arith.constant 0 : index
    %c0_42 = arith.constant 0 : index
    %95 = vector.load %arg5[%94, %c0_41, %c0_42] : memref<4x1x24xf32, #tpu.memory_space<vmem>>, vector<1x1x24xf32>
    %96 = vector.shape_cast %95 : vector<1x1x24xf32> to vector<1x24xf32>
    %97 = vector.broadcast %96 : vector<1x24xf32> to vector<8x24xf32>
    %98 = arith.addf %93, %97 : vector<8x24xf32>
    %99 = vector.extract_strided_slice %98 {offsets = [0, 0], sizes = [8, 8], strides = [1, 1]} : vector<8x24xf32> to vector<8x8xf32>
    %100 = arith.truncf %99 : vector<8x8xf32> to vector<8x8xbf16>
    %101 = vector.extract_strided_slice %98 {offsets = [0, 8], sizes = [8, 8], strides = [1, 1]} : vector<8x24xf32> to vector<8x8xf32>
    %102 = arith.truncf %101 : vector<8x8xf32> to vector<8x8xbf16>
    %103 = vector.extract_strided_slice %98 {offsets = [0, 16], sizes = [8, 8], strides = [1, 1]} : vector<8x24xf32> to vector<8x8xf32>
    %104 = arith.truncf %103 : vector<8x8xf32> to vector<8x8xbf16>
    %cst_43 = arith.constant dense<0.000000e+00> : vector<8x8xf32>
    %105 = tpu.matmul %100, %102, %cst_43 {dimension_numbers = #tpu.dot_dimension_numbers<[1], [1], [0], [0], [0, 0, 1, 0], [], []>} : vector<8x8xbf16>, vector<8x8xbf16>, vector<8x8xf32> -> vector<8x8xf32>
    %cst_44 = arith.constant dense<0xFF800000> : vector<8xf32>
    %106 = vector.multi_reduction <maximumf>, %105, %cst_44 [1] : vector<8x8xf32> to vector<8xf32>
    %107 = vector.shape_cast %106 : vector<8xf32> to vector<8x1xf32>
    %108 = vector.broadcast %107 : vector<8x1xf32> to vector<8x8xf32>
    %109 = arith.subf %105, %108 : vector<8x8xf32>
    %110 = math.exp %109 : vector<8x8xf32>
    %cst_45 = arith.constant dense<0.000000e+00> : vector<8xf32>
    %111 = vector.multi_reduction <add>, %110, %cst_45 [1] : vector<8x8xf32> to vector<8xf32>
    %112 = vector.shape_cast %111 : vector<8xf32> to vector<8x1xf32>
    %113 = tpu.reciprocal %112 {approx = true} : vector<8x1xf32> -> vector<8x1xf32>
    %114 = vector.broadcast %113 : vector<8x1xf32> to vector<8x8xf32>
    %115 = arith.mulf %110, %114 : vector<8x8xf32>
    %116 = arith.truncf %115 : vector<8x8xf32> to vector<8x8xbf16>
    %cst_46 = arith.constant dense<0.000000e+00> : vector<8x8xf32>
    %117 = tpu.matmul %116, %104, %cst_46 {dimension_numbers = #tpu.dot_dimension_numbers<[1], [0], [0], [1], [0, 0, 1, 1], [], []>} : vector<8x8xbf16>, vector<8x8xbf16>, vector<8x8xf32> -> vector<8x8xf32>
    %c0_47 = arith.constant 0 : index
    %c0_48 = arith.constant 0 : index
    %118 = vector.load %arg12[%c0_47, %c0_48] : memref<8x32xf32, #tpu.memory_space<vmem>>, vector<8x32xf32>
    %119 = arith.truncf %117 : vector<8x8xf32> to vector<8x8xbf16>
    %120 = arith.index_cast %c1_i32 : i32 to index
    %c0_49 = arith.constant 0 : index
    %c0_50 = arith.constant 0 : index
    %121 = vector.load %arg8[%120, %c0_49, %c0_50] : memref<4x8x32xbf16, #tpu.memory_space<vmem>>, vector<1x8x32xbf16>
    %122 = vector.shape_cast %121 : vector<1x8x32xbf16> to vector<8x32xbf16>
    %cst_51 = arith.constant dense<0.000000e+00> : vector<8x32xf32>
    %123 = tpu.matmul %119, %122, %cst_51 {dimension_numbers = #tpu.dot_dimension_numbers<[1], [0], [0], [1], [0, 0, 1, 1], [], []>} : vector<8x8xbf16>, vector<8x32xbf16>, vector<8x32xf32> -> vector<8x32xf32>
    %124 = arith.addf %118, %123 : vector<8x32xf32>
    %c0_52 = arith.constant 0 : index
    %c0_53 = arith.constant 0 : index
    %125 = vector.load %arg12[%c0_52, %c0_53] : memref<8x32xf32, #tpu.memory_space<vmem>>, vector<8x32xf32>
    tpu.vector_store %arg12[%c0_52, %c0_53], %124 {strides = array<i32>} : memref<8x32xf32, #tpu.memory_space<vmem>>, vector<8x32xf32>,
    %c2_i32 = arith.constant 2 : i32
    %126 = arith.index_cast %c2_i32 : i32 to index
    %c0_54 = arith.constant 0 : index
    %c0_55 = arith.constant 0 : index
    %127 = vector.load %arg6[%126, %c0_54, %c0_55] : memref<4x32x24xbf16, #tpu.memory_space<vmem>>, vector<1x32x24xbf16>
    %128 = vector.shape_cast %127 : vector<1x32x24xbf16> to vector<32x24xbf16>
    %cst_56 = arith.constant dense<0.000000e+00> : vector<8x24xf32>
    %129 = tpu.matmul %39, %128, %cst_56 {dimension_numbers = #tpu.dot_dimension_numbers<[1], [0], [0], [1], [0, 0, 1, 1], [], []>} : vector<8x32xbf16>, vector<32x24xbf16>, vector<8x24xf32> -> vector<8x24xf32>
    %130 = arith.index_cast %c2_i32 : i32 to index
    %c0_57 = arith.constant 0 : index
    %c0_58 = arith.constant 0 : index
    %131 = vector.load %arg7[%130, %c0_57, %c0_58] : memref<4x32x24xbf16, #tpu.memory_space<vmem>>, vector<1x32x24xbf16>
    %132 = vector.shape_cast %131 : vector<1x32x24xbf16> to vector<32x24xbf16>
    %cst_59 = arith.constant dense<0.000000e+00> : vector<8x24xf32>
    %133 = tpu.matmul %41, %132, %cst_59 {dimension_numbers = #tpu.dot_dimension_numbers<[1], [0], [0], [1], [0, 0, 1, 1], [], []>} : vector<8x32xbf16>, vector<32x24xbf16>, vector<8x24xf32> -> vector<8x24xf32>
    %134 = arith.addf %129, %133 : vector<8x24xf32>
    %135 = arith.index_cast %c2_i32 : i32 to index
    %c0_60 = arith.constant 0 : index
    %c0_61 = arith.constant 0 : index
    %136 = vector.load %arg5[%135, %c0_60, %c0_61] : memref<4x1x24xf32, #tpu.memory_space<vmem>>, vector<1x1x24xf32>
    %137 = vector.shape_cast %136 : vector<1x1x24xf32> to vector<1x24xf32>
    %138 = vector.broadcast %137 : vector<1x24xf32> to vector<8x24xf32>
    %139 = arith.addf %134, %138 : vector<8x24xf32>
    %140 = vector.extract_strided_slice %139 {offsets = [0, 0], sizes = [8, 8], strides = [1, 1]} : vector<8x24xf32> to vector<8x8xf32>
    %141 = arith.truncf %140 : vector<8x8xf32> to vector<8x8xbf16>
    %142 = vector.extract_strided_slice %139 {offsets = [0, 8], sizes = [8, 8], strides = [1, 1]} : vector<8x24xf32> to vector<8x8xf32>
    %143 = arith.truncf %142 : vector<8x8xf32> to vector<8x8xbf16>
    %144 = vector.extract_strided_slice %139 {offsets = [0, 16], sizes = [8, 8], strides = [1, 1]} : vector<8x24xf32> to vector<8x8xf32>
    %145 = arith.truncf %144 : vector<8x8xf32> to vector<8x8xbf16>
    %cst_62 = arith.constant dense<0.000000e+00> : vector<8x8xf32>
    %146 = tpu.matmul %141, %143, %cst_62 {dimension_numbers = #tpu.dot_dimension_numbers<[1], [1], [0], [0], [0, 0, 1, 0], [], []>} : vector<8x8xbf16>, vector<8x8xbf16>, vector<8x8xf32> -> vector<8x8xf32>
    %cst_63 = arith.constant dense<0xFF800000> : vector<8xf32>
    %147 = vector.multi_reduction <maximumf>, %146, %cst_63 [1] : vector<8x8xf32> to vector<8xf32>
    %148 = vector.shape_cast %147 : vector<8xf32> to vector<8x1xf32>
    %149 = vector.broadcast %148 : vector<8x1xf32> to vector<8x8xf32>
    %150 = arith.subf %146, %149 : vector<8x8xf32>
    %151 = math.exp %150 : vector<8x8xf32>
    %cst_64 = arith.constant dense<0.000000e+00> : vector<8xf32>
    %152 = vector.multi_reduction <add>, %151, %cst_64 [1] : vector<8x8xf32> to vector<8xf32>
    %153 = vector.shape_cast %152 : vector<8xf32> to vector<8x1xf32>
    %154 = tpu.reciprocal %153 {approx = true} : vector<8x1xf32> -> vector<8x1xf32>
    %155 = vector.broadcast %154 : vector<8x1xf32> to vector<8x8xf32>
    %156 = arith.mulf %151, %155 : vector<8x8xf32>
    %157 = arith.truncf %156 : vector<8x8xf32> to vector<8x8xbf16>
    %cst_65 = arith.constant dense<0.000000e+00> : vector<8x8xf32>
    %158 = tpu.matmul %157, %145, %cst_65 {dimension_numbers = #tpu.dot_dimension_numbers<[1], [0], [0], [1], [0, 0, 1, 1], [], []>} : vector<8x8xbf16>, vector<8x8xbf16>, vector<8x8xf32> -> vector<8x8xf32>
    %c0_66 = arith.constant 0 : index
    %c0_67 = arith.constant 0 : index
    %159 = vector.load %arg12[%c0_66, %c0_67] : memref<8x32xf32, #tpu.memory_space<vmem>>, vector<8x32xf32>
    %160 = arith.truncf %158 : vector<8x8xf32> to vector<8x8xbf16>
    %161 = arith.index_cast %c2_i32 : i32 to index
    %c0_68 = arith.constant 0 : index
    %c0_69 = arith.constant 0 : index
    %162 = vector.load %arg8[%161, %c0_68, %c0_69] : memref<4x8x32xbf16, #tpu.memory_space<vmem>>, vector<1x8x32xbf16>
    %163 = vector.shape_cast %162 : vector<1x8x32xbf16> to vector<8x32xbf16>
    %cst_70 = arith.constant dense<0.000000e+00> : vector<8x32xf32>
    %164 = tpu.matmul %160, %163, %cst_70 {dimension_numbers = #tpu.dot_dimension_numbers<[1], [0], [0], [1], [0, 0, 1, 1], [], []>} : vector<8x8xbf16>, vector<8x32xbf16>, vector<8x32xf32> -> vector<8x32xf32>
    %165 = arith.addf %159, %164 : vector<8x32xf32>
    %c0_71 = arith.constant 0 : index
    %c0_72 = arith.constant 0 : index
    %166 = vector.load %arg12[%c0_71, %c0_72] : memref<8x32xf32, #tpu.memory_space<vmem>>, vector<8x32xf32>
    tpu.vector_store %arg12[%c0_71, %c0_72], %165 {strides = array<i32>} : memref<8x32xf32, #tpu.memory_space<vmem>>, vector<8x32xf32>,
    %c3_i32 = arith.constant 3 : i32
    %167 = arith.index_cast %c3_i32 : i32 to index
    %c0_73 = arith.constant 0 : index
    %c0_74 = arith.constant 0 : index
    %168 = vector.load %arg6[%167, %c0_73, %c0_74] : memref<4x32x24xbf16, #tpu.memory_space<vmem>>, vector<1x32x24xbf16>
    %169 = vector.shape_cast %168 : vector<1x32x24xbf16> to vector<32x24xbf16>
    %cst_75 = arith.constant dense<0.000000e+00> : vector<8x24xf32>
    %170 = tpu.matmul %39, %169, %cst_75 {dimension_numbers = #tpu.dot_dimension_numbers<[1], [0], [0], [1], [0, 0, 1, 1], [], []>} : vector<8x32xbf16>, vector<32x24xbf16>, vector<8x24xf32> -> vector<8x24xf32>
    %171 = arith.index_cast %c3_i32 : i32 to index
    %c0_76 = arith.constant 0 : index
    %c0_77 = arith.constant 0 : index
    %172 = vector.load %arg7[%171, %c0_76, %c0_77] : memref<4x32x24xbf16, #tpu.memory_space<vmem>>, vector<1x32x24xbf16>
    %173 = vector.shape_cast %172 : vector<1x32x24xbf16> to vector<32x24xbf16>
    %cst_78 = arith.constant dense<0.000000e+00> : vector<8x24xf32>
    %174 = tpu.matmul %41, %173, %cst_78 {dimension_numbers = #tpu.dot_dimension_numbers<[1], [0], [0], [1], [0, 0, 1, 1], [], []>} : vector<8x32xbf16>, vector<32x24xbf16>, vector<8x24xf32> -> vector<8x24xf32>
    %175 = arith.addf %170, %174 : vector<8x24xf32>
    %176 = arith.index_cast %c3_i32 : i32 to index
    %c0_79 = arith.constant 0 : index
    %c0_80 = arith.constant 0 : index
    %177 = vector.load %arg5[%176, %c0_79, %c0_80] : memref<4x1x24xf32, #tpu.memory_space<vmem>>, vector<1x1x24xf32>
    %178 = vector.shape_cast %177 : vector<1x1x24xf32> to vector<1x24xf32>
    %179 = vector.broadcast %178 : vector<1x24xf32> to vector<8x24xf32>
    %180 = arith.addf %175, %179 : vector<8x24xf32>
    %181 = vector.extract_strided_slice %180 {offsets = [0, 0], sizes = [8, 8], strides = [1, 1]} : vector<8x24xf32> to vector<8x8xf32>
    %182 = arith.truncf %181 : vector<8x8xf32> to vector<8x8xbf16>
    %183 = vector.extract_strided_slice %180 {offsets = [0, 8], sizes = [8, 8], strides = [1, 1]} : vector<8x24xf32> to vector<8x8xf32>
    %184 = arith.truncf %183 : vector<8x8xf32> to vector<8x8xbf16>
    %185 = vector.extract_strided_slice %180 {offsets = [0, 16], sizes = [8, 8], strides = [1, 1]} : vector<8x24xf32> to vector<8x8xf32>
    %186 = arith.truncf %185 : vector<8x8xf32> to vector<8x8xbf16>
    %cst_81 = arith.constant dense<0.000000e+00> : vector<8x8xf32>
    %187 = tpu.matmul %182, %184, %cst_81 {dimension_numbers = #tpu.dot_dimension_numbers<[1], [1], [0], [0], [0, 0, 1, 0], [], []>} : vector<8x8xbf16>, vector<8x8xbf16>, vector<8x8xf32> -> vector<8x8xf32>
    %cst_82 = arith.constant dense<0xFF800000> : vector<8xf32>
    %188 = vector.multi_reduction <maximumf>, %187, %cst_82 [1] : vector<8x8xf32> to vector<8xf32>
    %189 = vector.shape_cast %188 : vector<8xf32> to vector<8x1xf32>
    %190 = vector.broadcast %189 : vector<8x1xf32> to vector<8x8xf32>
    %191 = arith.subf %187, %190 : vector<8x8xf32>
    %192 = math.exp %191 : vector<8x8xf32>
    %cst_83 = arith.constant dense<0.000000e+00> : vector<8xf32>
    %193 = vector.multi_reduction <add>, %192, %cst_83 [1] : vector<8x8xf32> to vector<8xf32>
    %194 = vector.shape_cast %193 : vector<8xf32> to vector<8x1xf32>
    %195 = tpu.reciprocal %194 {approx = true} : vector<8x1xf32> -> vector<8x1xf32>
    %196 = vector.broadcast %195 : vector<8x1xf32> to vector<8x8xf32>
    %197 = arith.mulf %192, %196 : vector<8x8xf32>
    %198 = arith.truncf %197 : vector<8x8xf32> to vector<8x8xbf16>
    %cst_84 = arith.constant dense<0.000000e+00> : vector<8x8xf32>
    %199 = tpu.matmul %198, %186, %cst_84 {dimension_numbers = #tpu.dot_dimension_numbers<[1], [0], [0], [1], [0, 0, 1, 1], [], []>} : vector<8x8xbf16>, vector<8x8xbf16>, vector<8x8xf32> -> vector<8x8xf32>
    %c0_85 = arith.constant 0 : index
    %c0_86 = arith.constant 0 : index
    %200 = vector.load %arg12[%c0_85, %c0_86] : memref<8x32xf32, #tpu.memory_space<vmem>>, vector<8x32xf32>
    %201 = arith.truncf %199 : vector<8x8xf32> to vector<8x8xbf16>
    %202 = arith.index_cast %c3_i32 : i32 to index
    %c0_87 = arith.constant 0 : index
    %c0_88 = arith.constant 0 : index
    %203 = vector.load %arg8[%202, %c0_87, %c0_88] : memref<4x8x32xbf16, #tpu.memory_space<vmem>>, vector<1x8x32xbf16>
    %204 = vector.shape_cast %203 : vector<1x8x32xbf16> to vector<8x32xbf16>
    %cst_89 = arith.constant dense<0.000000e+00> : vector<8x32xf32>
    %205 = tpu.matmul %201, %204, %cst_89 {dimension_numbers = #tpu.dot_dimension_numbers<[1], [0], [0], [1], [0, 0, 1, 1], [], []>} : vector<8x8xbf16>, vector<8x32xbf16>, vector<8x32xf32> -> vector<8x32xf32>
    %206 = arith.addf %200, %205 : vector<8x32xf32>
    %c0_90 = arith.constant 0 : index
    %c0_91 = arith.constant 0 : index
    %207 = vector.load %arg12[%c0_90, %c0_91] : memref<8x32xf32, #tpu.memory_space<vmem>>, vector<8x32xf32>
    tpu.vector_store %arg12[%c0_90, %c0_91], %206 {strides = array<i32>} : memref<8x32xf32, #tpu.memory_space<vmem>>, vector<8x32xf32>,
    %c4_i32 = arith.constant 4 : i32
    %c0_92 = arith.constant 0 : index
    %c0_93 = arith.constant 0 : index
    %208 = vector.load %arg12[%c0_92, %c0_93] : memref<8x32xf32, #tpu.memory_space<vmem>>, vector<8x32xf32>
    %209 = vector.broadcast %8 : vector<1x32xf32> to vector<8x32xf32>
    %210 = arith.addf %208, %209 : vector<8x32xf32>
    %211 = arith.addf %1, %210 : vector<8x32xf32>
    %212 = arith.addf %211, %210 : vector<8x32xf32>
    %cst_94 = arith.constant dense<0.000000e+00> : vector<8xf32>
    %213 = vector.multi_reduction <add>, %212, %cst_94 [1] : vector<8x32xf32> to vector<8xf32>
    %214 = vector.shape_cast %213 : vector<8xf32> to vector<8x1xf32>
    %cst_95 = arith.constant 3.200000e+01 : f32
    %215 = vector.broadcast %cst_95 : f32 to vector<8x1xf32>
    %216 = arith.divf %214, %215 : vector<8x1xf32>
    %217 = vector.broadcast %216 : vector<8x1xf32> to vector<8x32xf32>
    %218 = arith.subf %212, %217 : vector<8x32xf32>
    %219 = arith.mulf %218, %218 : vector<8x32xf32>
    %cst_96 = arith.constant dense<0.000000e+00> : vector<8xf32>
    %220 = vector.multi_reduction <add>, %219, %cst_96 [1] : vector<8x32xf32> to vector<8xf32>
    %221 = vector.shape_cast %220 : vector<8xf32> to vector<8x1xf32>
    %cst_97 = arith.constant 3.200000e+01 : f32
    %222 = vector.broadcast %cst_97 : f32 to vector<8x1xf32>
    %223 = arith.divf %221, %222 : vector<8x1xf32>
    %224 = vector.broadcast %216 : vector<8x1xf32> to vector<8x32xf32>
    %225 = arith.subf %212, %224 : vector<8x32xf32>
    %cst_98 = arith.constant 9.99999974E-6 : f32
    %226 = vector.broadcast %cst_98 : f32 to vector<8x1xf32>
    %227 = arith.addf %223, %226 : vector<8x1xf32>
    %228 = math.rsqrt %227 : vector<8x1xf32>
    %229 = vector.broadcast %228 : vector<8x1xf32> to vector<8x32xf32>
    %230 = arith.mulf %225, %229 : vector<8x32xf32>
    %231 = vector.broadcast %5 : vector<1x32xf32> to vector<8x32xf32>
    %232 = arith.mulf %230, %231 : vector<8x32xf32>
    %233 = vector.broadcast %6 : vector<1x32xf32> to vector<8x32xf32>
    %234 = arith.addf %232, %233 : vector<8x32xf32>
    %235 = arith.truncf %234 : vector<8x32xf32> to vector<8x32xbf16>
    %c0_99 = arith.constant 0 : index
    %c0_100 = arith.constant 0 : index
    %236 = vector.load %arg9[%c0_99, %c0_100] : memref<32x128xbf16, #tpu.memory_space<vmem>>, vector<32x128xbf16>
    %cst_101 = arith.constant dense<0.000000e+00> : vector<8x128xf32>
    %237 = tpu.matmul %235, %236, %cst_101 {dimension_numbers = #tpu.dot_dimension_numbers<[1], [0], [0], [1], [0, 0, 1, 1], [], []>} : vector<8x32xbf16>, vector<32x128xbf16>, vector<8x128xf32> -> vector<8x128xf32>
    %238 = vector.broadcast %9 : vector<1x128xf32> to vector<8x128xf32>
    %239 = arith.addf %237, %238 : vector<8x128xf32>
    %cst_102 = arith.constant 5.000000e-01 : f32
    %240 = vector.broadcast %cst_102 : f32 to vector<8x128xf32>
    %241 = arith.mulf %240, %239 : vector<8x128xf32>
    %cst_103 = arith.constant 0.707106769 : f32
    %242 = vector.broadcast %cst_103 : f32 to vector<8x128xf32>
    %243 = arith.mulf %239, %242 : vector<8x128xf32>
    %244 = math.absf %243 : vector<8x128xf32>
    %cst_104 = arith.constant 0.327591091 : f32
    %245 = vector.broadcast %cst_104 : f32 to vector<8x128xf32>
    %246 = arith.mulf %245, %244 : vector<8x128xf32>
    %cst_105 = arith.constant 1.000000e+00 : f32
    %247 = vector.broadcast %cst_105 : f32 to vector<8x128xf32>
    %248 = arith.addf %247, %246 : vector<8x128xf32>
    %249 = tpu.reciprocal %248 {approx = true} : vector<8x128xf32> -> vector<8x128xf32>
    %cst_106 = arith.constant 1.06140542 : f32
    %250 = vector.broadcast %cst_106 : f32 to vector<8x128xf32>
    %251 = arith.mulf %250, %249 : vector<8x128xf32>
    %cst_107 = arith.constant -1.45315206 : f32
    %252 = vector.broadcast %cst_107 : f32 to vector<8x128xf32>
    %253 = arith.addf %251, %252 : vector<8x128xf32>
    %254 = arith.mulf %253, %249 : vector<8x128xf32>
    %cst_108 = arith.constant 1.42141378 : f32
    %255 = vector.broadcast %cst_108 : f32 to vector<8x128xf32>
    %256 = arith.addf %254, %255 : vector<8x128xf32>
    %257 = arith.mulf %256, %249 : vector<8x128xf32>
    %cst_109 = arith.constant -0.284496725 : f32
    %258 = vector.broadcast %cst_109 : f32 to vector<8x128xf32>
    %259 = arith.addf %257, %258 : vector<8x128xf32>
    %260 = arith.mulf %259, %249 : vector<8x128xf32>
    %cst_110 = arith.constant 0.254829586 : f32
    %261 = vector.broadcast %cst_110 : f32 to vector<8x128xf32>
    %262 = arith.addf %260, %261 : vector<8x128xf32>
    %263 = arith.mulf %262, %249 : vector<8x128xf32>
    %cst_111 = arith.constant 0.000000e+00 : f32
    %264 = vector.broadcast %cst_111 : f32 to vector<8x128xf32>
    %265 = arith.subf %264, %244 : vector<8x128xf32>
    %266 = arith.mulf %265, %244 : vector<8x128xf32>
    %267 = math.exp %266 : vector<8x128xf32>
    %268 = arith.mulf %263, %267 : vector<8x128xf32>
    %cst_112 = arith.constant 1.000000e+00 : f32
    %269 = vector.broadcast %cst_112 : f32 to vector<8x128xf32>
    %270 = arith.subf %269, %268 : vector<8x128xf32>
    %cst_113 = arith.constant 0.000000e+00 : f32
    %271 = vector.broadcast %cst_113 : f32 to vector<8x128xf32>
    %272 = arith.cmpf olt, %243, %271 : vector<8x128xf32>
    %cst_114 = arith.constant 0.000000e+00 : f32
    %273 = vector.broadcast %cst_114 : f32 to vector<8x128xf32>
    %274 = arith.subf %273, %270 : vector<8x128xf32>
    %275 = arith.select %272, %274, %270 : vector<8x128xi1>, vector<8x128xf32>
    %cst_115 = arith.constant 1.000000e+00 : f32
    %276 = vector.broadcast %cst_115 : f32 to vector<8x128xf32>
    %277 = arith.addf %276, %275 : vector<8x128xf32>
    %278 = arith.mulf %241, %277 : vector<8x128xf32>
    %279 = arith.truncf %278 : vector<8x128xf32> to vector<8x128xbf16>
    %c0_116 = arith.constant 0 : index
    %c0_117 = arith.constant 0 : index
    %280 = vector.load %arg10[%c0_116, %c0_117] : memref<128x32xbf16, #tpu.memory_space<vmem>>, vector<128x32xbf16>
    %cst_118 = arith.constant dense<0.000000e+00> : vector<8x32xf32>
    %281 = tpu.matmul %279, %280, %cst_118 {dimension_numbers = #tpu.dot_dimension_numbers<[1], [0], [0], [1], [0, 0, 1, 1], [], []>} : vector<8x128xbf16>, vector<128x32xbf16>, vector<8x32xf32> -> vector<8x32xf32>
    %282 = vector.broadcast %10 : vector<1x32xf32> to vector<8x32xf32>
    %283 = arith.addf %281, %282 : vector<8x32xf32>
    %284 = arith.addf %211, %283 : vector<8x32xf32>
    %c0_119 = arith.constant 0 : index
    %c0_120 = arith.constant 0 : index
    %c0_121 = arith.constant 0 : index
    %285 = vector.load %arg11[%c0_119, %c0_120, %c0_121] : memref<1x8x32xf32, #tpu.memory_space<vmem>>, vector<1x8x32xf32>
    %286 = vector.shape_cast %285 : vector<1x8x32xf32> to vector<8x32xf32>
    %287 = vector.shape_cast %284 : vector<8x32xf32> to vector<1x8x32xf32>
    tpu.vector_store %arg11[%c0_119, %c0_120, %c0_121], %287 {strides = array<i32>} : memref<1x8x32xf32, #tpu.memory_space<vmem>>, vector<1x8x32xf32>,
    return
  }
  func.func @transform_0(%arg0: i32) -> (i32, i32, i32) {
    %c0_i32 = arith.constant 0 : i32
    %c0_i32_0 = arith.constant 0 : i32
    %c0_i32_1 = arith.constant 0 : i32
    return %arg0, %c0_i32, %c0_i32_0 : i32, i32, i32
  }
  func.func @transform_1(%arg0: i32) -> (i32, i32, i32) {
    %c0_i32 = arith.constant 0 : i32
    %c0_i32_0 = arith.constant 0 : i32
    %c0_i32_1 = arith.constant 0 : i32
    %c0_i32_2 = arith.constant 0 : i32
    return %c0_i32, %c0_i32_0, %c0_i32_1 : i32, i32, i32
  }
  func.func @transform_2(%arg0: i32) -> (i32, i32) {
    %c0_i32 = arith.constant 0 : i32
    %c0_i32_0 = arith.constant 0 : i32
    %c0_i32_1 = arith.constant 0 : i32
    return %c0_i32, %c0_i32_0 : i32, i32
  }
  func.func @transform_3(%arg0: i32) -> (i32, i32) {
    %c0_i32 = arith.constant 0 : i32
    %c0_i32_0 = arith.constant 0 : i32
    %c0_i32_1 = arith.constant 0 : i32
    return %c0_i32, %c0_i32_0 : i32, i32
  }
  func.func @transform_4(%arg0: i32) -> (i32, i32, i32) {
    %c0_i32 = arith.constant 0 : i32
    %c0_i32_0 = arith.constant 0 : i32
    %c0_i32_1 = arith.constant 0 : i32
    %c0_i32_2 = arith.constant 0 : i32
    return %c0_i32, %c0_i32_0, %c0_i32_1 : i32, i32, i32
  }
  func.func @transform_5(%arg0: i32) -> (i32, i32, i32) {
    %c0_i32 = arith.constant 0 : i32
    %c0_i32_0 = arith.constant 0 : i32
    %c0_i32_1 = arith.constant 0 : i32
    %c0_i32_2 = arith.constant 0 : i32
    return %c0_i32, %c0_i32_0, %c0_i32_1 : i32, i32, i32
  }
  func.func @transform_6(%arg0: i32) -> (i32, i32, i32) {
    %c0_i32 = arith.constant 0 : i32
    %c0_i32_0 = arith.constant 0 : i32
    %c0_i32_1 = arith.constant 0 : i32
    %c0_i32_2 = arith.constant 0 : i32
    return %c0_i32, %c0_i32_0, %c0_i32_1 : i32, i32, i32
  }
  func.func @transform_7(%arg0: i32) -> (i32, i32, i32) {
    %c0_i32 = arith.constant 0 : i32
    %c0_i32_0 = arith.constant 0 : i32
    %c0_i32_1 = arith.constant 0 : i32
    %c0_i32_2 = arith.constant 0 : i32
    return %c0_i32, %c0_i32_0, %c0_i32_1 : i32, i32, i32
  }
  func.func @transform_8(%arg0: i32) -> (i32, i32) {
    %c0_i32 = arith.constant 0 : i32
    %c0_i32_0 = arith.constant 0 : i32
    %c0_i32_1 = arith.constant 0 : i32
    return %c0_i32, %c0_i32_0 : i32, i32
  }
  func.func @transform_9(%arg0: i32) -> (i32, i32) {
    %c0_i32 = arith.constant 0 : i32
    %c0_i32_0 = arith.constant 0 : i32
    %c0_i32_1 = arith.constant 0 : i32
    return %c0_i32, %c0_i32_0 : i32, i32
  }
  func.func @transform_10(%arg0: i32) -> (i32, i32, i32) {
    %c0_i32 = arith.constant 0 : i32
    %c0_i32_0 = arith.constant 0 : i32
    %c0_i32_1 = arith.constant 0 : i32
    return %arg0, %c0_i32, %c0_i32_0 : i32, i32, i32
  }
}

</mosaic_0001>

<llo_original>
// kernel: tpu_custom_call.1
$region0: #{tpu_custom_call.1}
  #allocation0 [shape = 'u32[]', space=smem, size = 0x4, offset = 0x4, fixed_abs, tag = 'smem constant byte address 0x4 - core index']
  #allocation1 [shape = 'u32[144,128]{1,0:T(1,128)}', space=vmem, size = 0x12000, scoped, tag = 'internal scratch']
  #allocation2 [shape = 'f32[8,32]{1,0:T(8,128)}', space=vmem, size = 0x1000, scoped, tag = 'scratch operand']
  %s0 = inlined_call_operand.vmem [shape: f32[2,8,32], index: 0, kind: input, shape index: {}]
  %s1 = inlined_call_operand.vmem [shape: f32[2,8,32], index: 1, kind: input, shape index: {}]
  %s2 = inlined_call_operand.vmem [shape: f32[4,32], index: 2, kind: input, shape index: {}]
  %s3 = inlined_call_operand.vmem [shape: f32[3,128], index: 3, kind: input, shape index: {}]
  %s4 = inlined_call_operand.vmem [shape: f32[4,1,24], index: 4, kind: input, shape index: {}]
  %s5 = inlined_call_operand.vmem [shape: bf16[4,32,24], index: 5, kind: input, shape index: {}]
  %s6 = inlined_call_operand.vmem [shape: bf16[4,32,24], index: 6, kind: input, shape index: {}]
  %s7 = inlined_call_operand.vmem [shape: bf16[4,8,32], index: 7, kind: input, shape index: {}]
  %s8 = inlined_call_operand.vmem [shape: bf16[32,128], index: 8, kind: input, shape index: {}]
  %s9 = inlined_call_operand.vmem [shape: bf16[128,32], index: 9, kind: input, shape index: {}]
  %s10 = inlined_call_operand.hbm [shape: f32[2,8,32], index: 10, kind: output, shape index: {}]
  %s11 = sld [smem:[#allocation0]]
  $region73: #{tpu_custom_call.1} parent=0
    _
  %s13 = ssub.s32 1, %s11
  %s14 = scalar_select 0, %s13, %s11
  $region1: #{tpu_custom_call.1} parent=0
    #allocation3 [shape = 'u8[8192]{0}', space=vmem, size = 0x2000, scoped, tag = 'output window, operand 0']
    #allocation4 [shape = 's32[2]{0}', space=sflag, size = 0x8, scoped, tag = 'scoped memory for tpu_custom_call.1']
    %15 = vsyncpa [#allocation4], 0
    %s16 = scalar_lea.sflag [#allocation4], 1
    %17 = vsyncpa %s16, 0
    loop: start=0, step=1, limit=4
    $region2: #{tpu_custom_call.1} parent=1 // loop_pre_header
      _
    $region3: #{tpu_custom_call.1} parent=1 // loop_header
      %s19 = sphi 0, %s23
      %p20 = scmp.ge.s32.totalorder %s19, 4
      %s29 = sphi 0, %s31
      %s32 = sphi 0, %s29
      %s33 = sphi 0, %s32
      %s49 = sphi 0, %s33
      %s53 = sphi 0, %s53
      %s55 = sphi 0, %s53
      %s56 = sphi 0, %s55
      %s70 = sphi 0, %s56
      %s74 = sphi 0, %s74
      %s76 = sphi 0, %s74
      %s77 = sphi 0, %s76
      %s91 = sphi 0, %s77
      %s95 = sphi 0, %s95
      %s97 = sphi 0, %s95
      %s98 = sphi 0, %s97
      %s112 = sphi 0, %s98
      %s116 = sphi 0, %s116
      %s118 = sphi 0, %s116
      %s119 = sphi 0, %s118
      %s133 = sphi 0, %s119
      %s137 = sphi 0, %s137
      %s139 = sphi 0, %s137
      %s140 = sphi 0, %s139
      %s154 = sphi 0, %s140
      %s158 = sphi 0, %s158
      %s160 = sphi 0, %s158
      %s161 = sphi 0, %s160
      %s175 = sphi 0, %s161
      %s179 = sphi 0, %s179
      %s181 = sphi 0, %s179
      %s182 = sphi 0, %s181
      %s196 = sphi 0, %s182
      %s200 = sphi 0, %s200
      %s202 = sphi 0, %s200
      %s203 = sphi 0, %s202
      %s217 = sphi 0, %s203
      %s221 = sphi 0, %s221
      %s223 = sphi 0, %s221
      %s224 = sphi 0, %s223
      %s238 = sphi 0, %s224
      %s244 = sphi 0, %s246
      %s247 = sphi 0, %s244
      %s248 = sphi 0, %s247
      %s264 = sphi 0, %s248
    $region4: #{tpu_custom_call.1} parent=1 // loop_header_branch
      %22 = sbr.rel (%p20) target = $region8
    $region5: #{tpu_custom_call.1} parent=1 // loop_body
      %s24 = ssub.s32 %s19, 1
      %s25 = ssub.s32 %s19, 2
      %s26 = sadd.s32 %s19, 1
      %s27 = ssub.s32 %s19, %s26
      %p28 = scmp.eq.s32.totalorder %s27, 0
      %s30 = sadd.s32 %s29, 1
      %s31 = scalar_select %p28, %s29, %s30
      %p34 = pneg %p28
      %p35 = scmp.eq.s32.totalorder %s19, 1
      %p36 = por %p34, %p35
      %p37 = scmp.ne.s32.totalorder %s29, %s32
      %p38 = scmp.eq.s32.totalorder %s19, 0
      %p39 = por %p37, %p38
      %p40 = scmp.ne.s32.totalorder %s29, %s32
      %p41 = scmp.eq.s32.totalorder %s24, 1
      %p42 = por %p40, %p41
      %p43 = scmp.ne.s32.totalorder %s32, %s33
      %p44 = scmp.eq.s32.totalorder %s24, 0
      %p45 = por %p43, %p44
      %p46 = scmp.ne.s32.totalorder %s32, %s33
      %p47 = scmp.eq.s32.totalorder %s25, 1
      %p48 = por %p46, %p47
      %p50 = scmp.ne.s32.totalorder %s33, %s49
      %p51 = scmp.eq.s32.totalorder %s25, 0
      %p52 = por %p50, %p51
      %s54 = sadd.s32 %s53, 1
      %p57 = scmp.eq.s32.totalorder %s19, 1
      %p58 = scmp.ne.s32.totalorder %s53, %s55
      %p59 = scmp.eq.s32.totalorder %s19, 0
      %p60 = por %p58, %p59
      %p61 = scmp.ne.s32.totalorder %s53, %s55
      %p62 = scmp.eq.s32.totalorder %s24, 1
      %p63 = por %p61, %p62
      %p64 = scmp.ne.s32.totalorder %s55, %s56
      %p65 = scmp.eq.s32.totalorder %s24, 0
      %p66 = por %p64, %p65
      %p67 = scmp.ne.s32.totalorder %s55, %s56
      %p68 = scmp.eq.s32.totalorder %s25, 1
      %p69 = por %p67, %p68
      %p71 = scmp.ne.s32.totalorder %s56, %s70
      %p72 = scmp.eq.s32.totalorder %s25, 0
      %p73 = por %p71, %p72
      %s75 = sadd.s32 %s74, 1
      %p78 = scmp.eq.s32.totalorder %s19, 1
      %p79 = scmp.ne.s32.totalorder %s74, %s76
      %p80 = scmp.eq.s32.totalorder %s19, 0
      %p81 = por %p79, %p80
      %p82 = scmp.ne.s32.totalorder %s74, %s76
      %p83 = scmp.eq.s32.totalorder %s24, 1
      %p84 = por %p82, %p83
      %p85 = scmp.ne.s32.totalorder %s76, %s77
      %p86 = scmp.eq.s32.totalorder %s24, 0
      %p87 = por %p85, %p86
      %p88 = scmp.ne.s32.totalorder %s76, %s77
      %p89 = scmp.eq.s32.totalorder %s25, 1
      %p90 = por %p88, %p89
      %p92 = scmp.ne.s32.totalorder %s77, %s91
      %p93 = scmp.eq.s32.totalorder %s25, 0
      %p94 = por %p92, %p93
      %s96 = sadd.s32 %s95, 1
      %p99 = scmp.eq.s32.totalorder %s19, 1
      %p100 = scmp.ne.s32.totalorder %s95, %s97
      %p101 = scmp.eq.s32.totalorder %s19, 0
      %p102 = por %p100, %p101
      %p103 = scmp.ne.s32.totalorder %s95, %s97
      %p104 = scmp.eq.s32.totalorder %s24, 1
      %p105 = por %p103, %p104
      %p106 = scmp.ne.s32.totalorder %s97, %s98
      %p107 = scmp.eq.s32.totalorder %s24, 0
      %p108 = por %p106, %p107
      %p109 = scmp.ne.s32.totalorder %s97, %s98
      %p110 = scmp.eq.s32.totalorder %s25, 1
      %p111 = por %p109, %p110
      %p113 = scmp.ne.s32.totalorder %s98, %s112
      %p114 = scmp.eq.s32.totalorder %s25, 0
      %p115 = por %p113, %p114
      %s117 = sadd.s32 %s116, 1
      %p120 = scmp.eq.s32.totalorder %s19, 1
      %p121 = scmp.ne.s32.totalorder %s116, %s118
      %p122 = scmp.eq.s32.totalorder %s19, 0
      %p123 = por %p121, %p122
      %p124 = scmp.ne.s32.totalorder %s116, %s118
      %p125 = scmp.eq.s32.totalorder %s24, 1
      %p126 = por %p124, %p125
      %p127 = scmp.ne.s32.totalorder %s118, %s119
      %p128 = scmp.eq.s32.totalorder %s24, 0
      %p129 = por %p127, %p128
      %p130 = scmp.ne.s32.totalorder %s118, %s119
      %p131 = scmp.eq.s32.totalorder %s25, 1
      %p132 = por %p130, %p131
      %p134 = scmp.ne.s32.totalorder %s119, %s133
      %p135 = scmp.eq.s32.totalorder %s25, 0
      %p136 = por %p134, %p135
      %s138 = sadd.s32 %s137, 1
      %p141 = scmp.eq.s32.totalorder %s19, 1
      %p142 = scmp.ne.s32.totalorder %s137, %s139
      %p143 = scmp.eq.s32.totalorder %s19, 0
      %p144 = por %p142, %p143
      %p145 = scmp.ne.s32.totalorder %s137, %s139
      %p146 = scmp.eq.s32.totalorder %s24, 1
      %p147 = por %p145, %p146
      %p148 = scmp.ne.s32.totalorder %s139, %s140
      %p149 = scmp.eq.s32.totalorder %s24, 0
      %p150 = por %p148, %p149
      %p151 = scmp.ne.s32.totalorder %s139, %s140
      %p152 = scmp.eq.s32.totalorder %s25, 1
      %p153 = por %p151, %p152
      %p155 = scmp.ne.s32.totalorder %s140, %s154
      %p156 = scmp.eq.s32.totalorder %s25, 0
      %p157 = por %p155, %p156
      %s159 = sadd.s32 %s158, 1
      %p162 = scmp.eq.s32.totalorder %s19, 1
      %p163 = scmp.ne.s32.totalorder %s158, %s160
      %p164 = scmp.eq.s32.totalorder %s19, 0
      %p165 = por %p163, %p164
      %p166 = scmp.ne.s32.totalorder %s158, %s160
      %p167 = scmp.eq.s32.totalorder %s24, 1
      %p168 = por %p166, %p167
      %p169 = scmp.ne.s32.totalorder %s160, %s161
      %p170 = scmp.eq.s32.totalorder %s24, 0
      %p171 = por %p169, %p170
      %p172 = scmp.ne.s32.totalorder %s160, %s161
      %p173 = scmp.eq.s32.totalorder %s25, 1
      %p174 = por %p172, %p173
      %p176 = scmp.ne.s32.totalorder %s161, %s175
      %p177 = scmp.eq.s32.totalorder %s25, 0
      %p178 = por %p176, %p177
      %s180 = sadd.s32 %s179, 1
      %p183 = scmp.eq.s32.totalorder %s19, 1
      %p184 = scmp.ne.s32.totalorder %s179, %s181
      %p185 = scmp.eq.s32.totalorder %s19, 0
      %p186 = por %p184, %p185
      %p187 = scmp.ne.s32.totalorder %s179, %s181
      %p188 = scmp.eq.s32.totalorder %s24, 1
      %p189 = por %p187, %p188
      %p190 = scmp.ne.s32.totalorder %s181, %s182
      %p191 = scmp.eq.s32.totalorder %s24, 0
      %p192 = por %p190, %p191
      %p193 = scmp.ne.s32.totalorder %s181, %s182
      %p194 = scmp.eq.s32.totalorder %s25, 1
      %p195 = por %p193, %p194
      %p197 = scmp.ne.s32.totalorder %s182, %s196
      %p198 = scmp.eq.s32.totalorder %s25, 0
      %p199 = por %p197, %p198
      %s201 = sadd.s32 %s200, 1
      %p204 = scmp.eq.s32.totalorder %s19, 1
      %p205 = scmp.ne.s32.totalorder %s200, %s202
      %p206 = scmp.eq.s32.totalorder %s19, 0
      %p207 = por %p205, %p206
      %p208 = scmp.ne.s32.totalorder %s200, %s202
      %p209 = scmp.eq.s32.totalorder %s24, 1
      %p210 = por %p208, %p209
      %p211 = scmp.ne.s32.totalorder %s202, %s203
      %p212 = scmp.eq.s32.totalorder %s24, 0
      %p213 = por %p211, %p212
      %p214 = scmp.ne.s32.totalorder %s202, %s203
      %p215 = scmp.eq.s32.totalorder %s25, 1
      %p216 = por %p214, %p215
      %p218 = scmp.ne.s32.totalorder %s203, %s217
      %p219 = scmp.eq.s32.totalorder %s25, 0
      %p220 = por %p218, %p219
      %s222 = sadd.s32 %s221, 1
      %p225 = scmp.eq.s32.totalorder %s19, 1
      %p226 = scmp.ne.s32.totalorder %s221, %s223
      %p227 = scmp.eq.s32.totalorder %s19, 0
      %p228 = por %p226, %p227
      %p229 = scmp.ne.s32.totalorder %s221, %s223
      %p230 = scmp.eq.s32.totalorder %s24, 1
      %p231 = por %p229, %p230
      %p232 = scmp.ne.s32.totalorder %s223, %s224
      %p233 = scmp.eq.s32.totalorder %s24, 0
      %p234 = por %p232, %p233
      %p235 = scmp.ne.s32.totalorder %s223, %s224
      %p236 = scmp.eq.s32.totalorder %s25, 1
      %p237 = por %p235, %p236
      %p239 = scmp.ne.s32.totalorder %s224, %s238
      %p240 = scmp.eq.s32.totalorder %s25, 0
      %p241 = por %p239, %p240
      %s242 = ssub.s32 %s19, %s26
      %p243 = scmp.eq.s32.totalorder %s242, 0
      %s245 = sadd.s32 %s244, 1
      %s246 = scalar_select %p243, %s244, %s245
      %p249 = pneg %p243
      %p250 = scmp.eq.s32.totalorder %s19, 1
      %p251 = por %p249, %p250
      %p252 = scmp.ne.s32.totalorder %s244, %s247
      %p253 = scmp.eq.s32.totalorder %s19, 0
      %p254 = por %p252, %p253
      %p255 = scmp.ne.s32.totalorder %s244, %s247
      %p256 = scmp.eq.s32.totalorder %s24, 1
      %p257 = por %p255, %p256
      %p258 = scmp.ne.s32.totalorder %s247, %s248
      %p259 = scmp.eq.s32.totalorder %s24, 0
      %p260 = por %p258, %p259
      %p261 = scmp.ne.s32.totalorder %s247, %s248
      %p262 = scmp.eq.s32.totalorder %s25, 1
      %p263 = por %p261, %p262
      %p265 = scmp.ne.s32.totalorder %s248, %s264
      %p266 = scmp.eq.s32.totalorder %s25, 0
      %p267 = por %p265, %p266
      %p268 = scmp.le.s32.totalorder 1, %s19
      %p269 = scmp.lt.s32.totalorder %s19, 3
      %p270 = pnand %p268, %p269
      %p271 = pneg %p270
      // Predicated region
      $region9: #{tpu_custom_call.1} parent=5 // pred_check
        _
      $region10: #{tpu_custom_call.1} parent=5 // pred_check_branch
        %273 = sbr.rel (%p270) target = $region12
      $region11: #{tpu_custom_call.1} parent=5 // pred_region
        %s274 = ssub.s32 %s19, 1
        // Predicated region
        $region13: #{tpu_custom_call.1} parent=11 // pred_check
          %p275 = pneg %p66
        $region14: #{tpu_custom_call.1} parent=11 // pred_check_branch
          %277 = sbr.rel (%p275) target = $region16
        $region15: #{tpu_custom_call.1} parent=11 // pred_region
          _
        $region16: #{tpu_custom_call.1} parent=11 // pred_fallthru
          _
        // Predicated region
        $region17: #{tpu_custom_call.1} parent=11 // pred_check
          %p278 = pneg %p87
        $region18: #{tpu_custom_call.1} parent=11 // pred_check_branch
          %280 = sbr.rel (%p278) target = $region20
        $region19: #{tpu_custom_call.1} parent=11 // pred_region
          _
        $region20: #{tpu_custom_call.1} parent=11 // pred_fallthru
          _
        // Predicated region
        $region21: #{tpu_custom_call.1} parent=11 // pred_check
          %p281 = pneg %p108
        $region22: #{tpu_custom_call.1} parent=11 // pred_check_branch
          %283 = sbr.rel (%p281) target = $region24
        $region23: #{tpu_custom_call.1} parent=11 // pred_region
          _
        $region24: #{tpu_custom_call.1} parent=11 // pred_fallthru
          _
        // Predicated region
        $region25: #{tpu_custom_call.1} parent=11 // pred_check
          %p284 = pneg %p129
        $region26: #{tpu_custom_call.1} parent=11 // pred_check_branch
          %286 = sbr.rel (%p284) target = $region28
        $region27: #{tpu_custom_call.1} parent=11 // pred_region
          _
        $region28: #{tpu_custom_call.1} parent=11 // pred_fallthru
          _
        // Predicated region
        $region29: #{tpu_custom_call.1} parent=11 // pred_check
          %p287 = pneg %p150
        $region30: #{tpu_custom_call.1} parent=11 // pred_check_branch
          %289 = sbr.rel (%p287) target = $region32
        $region31: #{tpu_custom_call.1} parent=11 // pred_region
          _
        $region32: #{tpu_custom_call.1} parent=11 // pred_fallthru
          _
        // Predicated region
        $region33: #{tpu_custom_call.1} parent=11 // pred_check
          %p290 = pneg %p171
        $region34: #{tpu_custom_call.1} parent=11 // pred_check_branch
          %292 = sbr.rel (%p290) target = $region36
        $region35: #{tpu_custom_call.1} parent=11 // pred_region
          _
        $region36: #{tpu_custom_call.1} parent=11 // pred_fallthru
          _
        // Predicated region
        $region37: #{tpu_custom_call.1} parent=11 // pred_check
          %p293 = pneg %p192
        $region38: #{tpu_custom_call.1} parent=11 // pred_check_branch
          %295 = sbr.rel (%p293) target = $region40
        $region39: #{tpu_custom_call.1} parent=11 // pred_region
          _
        $region40: #{tpu_custom_call.1} parent=11 // pred_fallthru
          _
        // Predicated region
        $region41: #{tpu_custom_call.1} parent=11 // pred_check
          %p296 = pneg %p213
        $region42: #{tpu_custom_call.1} parent=11 // pred_check_branch
          %298 = sbr.rel (%p296) target = $region44
        $region43: #{tpu_custom_call.1} parent=11 // pred_region
          _
        $region44: #{tpu_custom_call.1} parent=11 // pred_fallthru
          _
        // Predicated region
        $region45: #{tpu_custom_call.1} parent=11 // pred_check
          %p299 = pneg %p234
        $region46: #{tpu_custom_call.1} parent=11 // pred_check_branch
          %301 = sbr.rel (%p299) target = $region48
        $region47: #{tpu_custom_call.1} parent=11 // pred_region
          _
        $region48: #{tpu_custom_call.1} parent=11 // pred_fallthru
          _
      $region12: #{tpu_custom_call.1} parent=5 // pred_fallthru
        _
      %p302 = scmp.lt.s32.totalorder %s19, 2
      // Predicated region
      $region49: #{tpu_custom_call.1} parent=5 // pred_check
        %p303 = pneg %p302
      $region50: #{tpu_custom_call.1} parent=5 // pred_check_branch
        %305 = sbr.rel (%p303) target = $region52
      $region51: #{tpu_custom_call.1} parent=5 // pred_region
        // Predicated region
        $region53: #{tpu_custom_call.1} parent=51 // pred_check
          %p306 = pneg %p39
        $region54: #{tpu_custom_call.1} parent=51 // pred_check_branch
          %308 = sbr.rel (%p306) target = $region56
        $region55: #{tpu_custom_call.1} parent=51 // pred_region
          %p309 = scmp.lt.s32.totalorder %s19, 1
          %s310 = scalar_select %p309, %s19, 1
          %s311 = smul.addr %s310, 8
          %s312 = scalar_lea.vmem %s0, %s311
        $region56: #{tpu_custom_call.1} parent=51 // pred_fallthru
          _
      $region52: #{tpu_custom_call.1} parent=5 // pred_fallthru
        _
      %p313 = scmp.le.s32.totalorder 1, %s19
      %p314 = scmp.lt.s32.totalorder %s19, 3
      %p315 = pnand %p313, %p314
      %p316 = pneg %p315
      // Predicated region
      $region57: #{tpu_custom_call.1} parent=5 // pred_check
        _
      $region58: #{tpu_custom_call.1} parent=5 // pred_check_branch
        %318 = sbr.rel (%p315) target = $region60
      $region59: #{tpu_custom_call.1} parent=5 // pred_region
        %s319 = ssub.s32 %s19, 1
        %p320 = scmp.lt.s32.totalorder %s24, 1
        %s321 = scalar_select %p320, %s24, 1
        %s322 = smul.addr %s321, 8
        %s323 = scalar_lea.vmem %s0, %s322
        %p324 = pneg %p45
        %p325 = pneg %p42
        %p326 = pneg %p66
        %p327 = pneg %p63
        %p328 = pneg %p87
        %p329 = pneg %p84
        %p330 = pneg %p108
        %p331 = pneg %p105
        %p332 = pneg %p129
        %p333 = pneg %p126
        %p334 = pneg %p150
        %p335 = pneg %p147
        %p336 = pneg %p171
        %p337 = pneg %p168
        %p338 = pneg %p192
        %p339 = pneg %p189
        %p340 = pneg %p213
        %p341 = pneg %p210
        %p342 = pneg %p234
        %p343 = pneg %p231
        %p344 = pneg %p260
        %p345 = pneg %p257
        %s346 = sand.u32 %s247, 1
        %s347 = scalar_lea.sflag [#allocation4], %s346
        %s348 = sand.u32 %s247, 1
        %s349 = smul.addr %s348, 8
        %s350 = scalar_lea.vmem [#allocation3], %s349
        %p351 = scmp.lt.s32.totalorder %s24, 1
        %s352 = scalar_select %p351, %s24, 1
        %s353 = smul.addr %s352, 8
        %s354 = scalar_lea.vmem %s0, %s353
        %v356 = vld [vmem:[%s354] sm:$0xff]
        %v357 = vld [vmem:[%s2] sm:$0xf]
        %v358 = vld [vmem:[%s3] sm:$0x7]
        %v359 = vld [vmem:[%s1] sm:$0xff]
        %v360 = vld [vmem:[%s1 + $0x8] sm:$0xff]
        %vm361 = vcmask 261120
        %v362 = vsel %vm361, %v356, 0.0
        %363 = vadd.xlane.f32.xlu0 %v362
        %v364 = vpop.xlane.xlu0 %363
        %v365 = vrcp.pop 32.0
        %v366 = vmul.f32 %v364, %v365
        %v367 = vsub.f32 %v356, %v366
        %v368 = vmul.f32 %v367, %v367
        %v369 = vsel %vm361, %v368, 0.0
        %370 = vadd.xlane.f32.xlu0 %v369
        %v371 = vpop.xlane.xlu0 %370
        %v372 = vmul.f32 %v371, %v365
        %v373 = vadd.f32 %v372, 1e-05
        %v374 = vrsqrt.pop %v373
        %v375 = vmul.f32 %v367, %v374
        %v376 = vlaneseq
        %v377 = vshrl.u32 %v376, 7
        %v378 = vsub.s32 0, %v377
        %v379 = vrot.slane %v357, %v378
        %v380 = vmul.f32 %v375, %v379
        %v381 = vlaneseq
        %v382 = vshrl.u32 %v381, 7
        %v383 = vsub.s32 1, %v382
        %v384 = vrot.slane %v357, %v383
        %v385 = vadd.f32 %v380, %v384
        %v386 = vmul.f32 %v385, %v359
        %v387 = vpack.c.bf16 %v386, %v386
        %v388 = vmul.f32 %v385, %v360
        %v389 = vpack.c.bf16 %v388, %v388
        %390 = vst.msk [vmem:[#allocation2] sm:$0xff] %vm361, 0.0
        %v391 = vld [vmem:[%s5] sm:$0xf]
        %v392 = vld [vmem:[%s5 + $0x4] sm:$0xf]
        %v393 = vld [vmem:[%s5 + $0x8] sm:$0xf]
        %v394 = vld [vmem:[%s5 + $0xc] sm:$0xf]
        %v395 = vld [vmem:[%s6] sm:$0xf]
        %v396 = vld [vmem:[%s6 + $0x4] sm:$0xf]
        %v397 = vld [vmem:[%s6 + $0x8] sm:$0xf]
        %v398 = vld [vmem:[%s6 + $0xc] sm:$0xf]
        %v403 = vunpack.c.l.b16 %v395
        %v404 = vunpack.c.l.b16 %v396
        %v405 = vunpack.c.l.b16 %v397
        %v406 = vunpack.c.l.b16 %v398
        %v407 = vpack.c.b16 %v404, %v403
        %v408 = vpack.c.b16 %v406, %v405
        %v412 = vsel %vm361, %v389, 0
        %414 = vmatprep.subr.bf16.mxu0 0
        %415 = vmatpush1.bf16.msra.mxu0 %v407
        %416 = vmatprep.subr.bf16.mxu0 0
        %417 = vmatpush1.bf16.msra.mxu0 %v408
        %418 = vmatprep.subr.bf16.mxu0 0
        %419 = vmatpush1.bf16.msra.mxu0 0
        %420 = vmatprep.subr.bf16.mxu0 0
        %421 = vmatpush1.bf16.msra.mxu0 0
        %422 = vmatprep.subr.bf16.mxu0 0
        %423 = vmatpush1.bf16.msra.mxu0 0
        %424 = vmatprep.subr.bf16.mxu0 0
        %425 = vmatpush1.bf16.msra.mxu0 0
        %426 = vmatprep.subr.bf16.mxu0 0
        %427 = vmatpush1.bf16.msra.mxu0 0
        %428 = vmatprep.subr.bf16.mxu0 0
        %429 = vmatpush1.bf16.msra.mxu0 0
        %430 = vmatprep.subr.bf16.mxu0 0
        %431 = vmatpush1.bf16.msra.mxu0 0
        %432 = vmatprep.subr.bf16.mxu0 0
        %433 = vmatpush1.bf16.msra.mxu0 0
        %434 = vmatprep.subr.bf16.mxu0 0
        %435 = vmatpush1.bf16.msra.mxu0 0
        %436 = vmatprep.subr.bf16.mxu0 0
        %437 = vmatpush1.bf16.msra.mxu0 0
        %438 = vmatprep.subr.bf16.mxu0 0
        %439 = vmatpush1.bf16.msra.mxu0 0
        %440 = vmatprep.subr.bf16.mxu0 0
        %441 = vmatpush1.bf16.msra.mxu0 0
        %442 = vmatprep.subr.bf16.mxu0 0
        %443 = vmatpush1.bf16.msra.mxu0 0
        %444 = vmatprep.subr.bf16.mxu0 0
        %445 = vmatpush1.bf16.msra.mxu0 0
        %446 = vmatprep.mubr.bf16.mxu0 0
        %447 = vmatmul.mubr.bf16.gmra.mrb[0].mxu0 %v412
        %v448 = vpop.f32.mrb[0].mxu0
        %v449 = vadd.f32 0.0, %v448
        %v450 = vpop.f32.mrb[0].mxu0
        %v451 = vpop.f32.mrb[0].mxu0
        %v452 = vpop.f32.mrb[0].mxu0
        %453 = vdwg.mxu0
        %v458 = vunpack.c.l.b16 %v391
        %v459 = vunpack.c.l.b16 %v392
        %v460 = vunpack.c.l.b16 %v393
        %v461 = vunpack.c.l.b16 %v394
        %v462 = vpack.c.b16 %v459, %v458
        %v463 = vpack.c.b16 %v461, %v460
        %v467 = vsel %vm361, %v387, 0
        %469 = vmatprep.subr.bf16.mxu0 0
        %470 = vmatpush1.bf16.msra.mxu0 %v462
        %471 = vmatprep.subr.bf16.mxu0 0
        %472 = vmatpush1.bf16.msra.mxu0 %v463
        %473 = vmatprep.subr.bf16.mxu0 0
        %474 = vmatpush1.bf16.msra.mxu0 0
        %475 = vmatprep.subr.bf16.mxu0 0
        %476 = vmatpush1.bf16.msra.mxu0 0
        %477 = vmatprep.subr.bf16.mxu0 0
        %478 = vmatpush1.bf16.msra.mxu0 0
        %479 = vmatprep.subr.bf16.mxu0 0
        %480 = vmatpush1.bf16.msra.mxu0 0
        %481 = vmatprep.subr.bf16.mxu0 0
        %482 = vmatpush1.bf16.msra.mxu0 0
        %483 = vmatprep.subr.bf16.mxu0 0
        %484 = vmatpush1.bf16.msra.mxu0 0
        %485 = vmatprep.subr.bf16.mxu0 0
        %486 = vmatpush1.bf16.msra.mxu0 0
        %487 = vmatprep.subr.bf16.mxu0 0
        %488 = vmatpush1.bf16.msra.mxu0 0
        %489 = vmatprep.subr.bf16.mxu0 0
        %490 = vmatpush1.bf16.msra.mxu0 0
        %491 = vmatprep.subr.bf16.mxu0 0
        %492 = vmatpush1.bf16.msra.mxu0 0
        %493 = vmatprep.subr.bf16.mxu0 0
        %494 = vmatpush1.bf16.msra.mxu0 0
        %495 = vmatprep.subr.bf16.mxu0 0
        %496 = vmatpush1.bf16.msra.mxu0 0
        %497 = vmatprep.subr.bf16.mxu0 0
        %498 = vmatpush1.bf16.msra.mxu0 0
        %499 = vmatprep.subr.bf16.mxu0 0
        %500 = vmatpush1.bf16.msra.mxu0 0
        %501 = vmatprep.mubr.bf16.mxu0 0
        %502 = vmatmul.mubr.bf16.gmra.mrb[0].mxu0 %v467
        %v503 = vpop.f32.mrb[0].mxu0
        %v504 = vadd.f32 %v449, %v503
        %v505 = vpop.f32.mrb[0].mxu0
        %v506 = vpop.f32.mrb[0].mxu0
        %v507 = vpop.f32.mrb[0].mxu0
        %508 = vdwg.mxu0
        %v509 = vld [vmem:[%s4] sm:$0x1]
        %v511 = vlaneseq
        %v512 = vshrl.u32 %v511, 7
        %v513 = vsub.s32 0, %v512
        %v514 = vrot.slane %v509, %v513
        %v516 = vadd.f32 %v504, %v514
        %v517 = vpack.c.bf16 %v516, %v516
        %519 = vrot.lane.b32.xlu0 %v517, 120
        %v520 = vpop.permute.xlu0 %519
        %vm521 = vcmask 64512
        %v523 = vsel %vm521, %v517, 0
        %v526 = vsel %vm521, %v520, 0
        %528 = vmatprep.subr.bf16.mxu0 0
        %529 = vmatpush1.bf16.xpose.msra.mxu0 %v526
        %530 = vmatprep.subr.bf16.mxu0 0
        %531 = vmatpush1.bf16.xpose.msra.mxu0 0
        %532 = vmatprep.subr.bf16.mxu0 0
        %533 = vmatpush1.bf16.xpose.msra.mxu0 0
        %534 = vmatprep.subr.bf16.mxu0 0
        %535 = vmatpush1.bf16.xpose.msra.mxu0 0
        %536 = vmatprep.subr.bf16.mxu0 0
        %537 = vmatpush1.bf16.xpose.msra.mxu0 0
        %538 = vmatprep.subr.bf16.mxu0 0
        %539 = vmatpush1.bf16.xpose.msra.mxu0 0
        %540 = vmatprep.subr.bf16.mxu0 0
        %541 = vmatpush1.bf16.xpose.msra.mxu0 0
        %542 = vmatprep.subr.bf16.mxu0 0
        %543 = vmatpush1.bf16.xpose.msra.mxu0 0
        %544 = vmatprep.subr.bf16.mxu0 0
        %545 = vmatpush1.bf16.xpose.msra.mxu0 0
        %546 = vmatprep.subr.bf16.mxu0 0
        %547 = vmatpush1.bf16.xpose.msra.mxu0 0
        %548 = vmatprep.subr.bf16.mxu0 0
        %549 = vmatpush1.bf16.xpose.msra.mxu0 0
        %550 = vmatprep.subr.bf16.mxu0 0
        %551 = vmatpush1.bf16.xpose.msra.mxu0 0
        %552 = vmatprep.subr.bf16.mxu0 0
        %553 = vmatpush1.bf16.xpose.msra.mxu0 0
        %554 = vmatprep.subr.bf16.mxu0 0
        %555 = vmatpush1.bf16.xpose.msra.mxu0 0
        %556 = vmatprep.subr.bf16.mxu0 0
        %557 = vmatpush1.bf16.xpose.msra.mxu0 0
        %558 = vmatprep.subr.bf16.mxu0 0
        %559 = vmatpush1.bf16.xpose.msra.mxu0 0
        %560 = vmatprep.mubr.bf16.mxu0 0
        %561 = vmatmul.mubr.bf16.gmra.mrb[0].mxu0 %v523
        %v562 = vpop.f32.mrb[0].mxu0
        %v563 = vadd.f32 0.0, %v562
        %v564 = vpop.f32.mrb[0].mxu0
        %v565 = vpop.f32.mrb[0].mxu0
        %v566 = vpop.f32.mrb[0].mxu0
        %567 = vdwg.mxu0
        %v568 = vsel %vm521, %v563, -inf
        %569 = vmax.xlane.f32.xlu0 %v568
        %v570 = vpop.xlane.xlu0 %569
        %v571 = vsub.f32 %v563, %v570
        %v572 = vmul.f32 %v571, 1.442695
        %v573 = vpow.pop %v572
        %v574 = vsel %vm521, %v573, 0.0
        %575 = vadd.xlane.f32.xlu0 %v574
        %v576 = vpop.xlane.xlu0 %575
        %v577 = vrcp.pop %v576
        %v578 = vmul.f32 %v573, %v577
        %v579 = vpack.c.bf16 %v578, %v578
        %580 = vrot.lane.b32.xlu0 %v517, 112
        %v581 = vpop.permute.xlu0 %580
        %v583 = vsel %vm521, %v579, 0
        %vm585 = vcmask 1043456
        %v587 = vsel %vm585, %v581, 0
        %589 = vmatprep.subr.bf16.mxu0 0
        %590 = vmatpush1.bf16.msra.mxu0 %v587
        %591 = vmatprep.subr.bf16.mxu0 0
        %592 = vmatpush1.bf16.msra.mxu0 0
        %593 = vmatprep.subr.bf16.mxu0 0
        %594 = vmatpush1.bf16.msra.mxu0 0
        %595 = vmatprep.subr.bf16.mxu0 0
        %596 = vmatpush1.bf16.msra.mxu0 0
        %597 = vmatprep.subr.bf16.mxu0 0
        %598 = vmatpush1.bf16.msra.mxu0 0
        %599 = vmatprep.subr.bf16.mxu0 0
        %600 = vmatpush1.bf16.msra.mxu0 0
        %601 = vmatprep.subr.bf16.mxu0 0
        %602 = vmatpush1.bf16.msra.mxu0 0
        %603 = vmatprep.subr.bf16.mxu0 0
        %604 = vmatpush1.bf16.msra.mxu0 0
        %605 = vmatprep.subr.bf16.mxu0 0
        %606 = vmatpush1.bf16.msra.mxu0 0
        %607 = vmatprep.subr.bf16.mxu0 0
        %608 = vmatpush1.bf16.msra.mxu0 0
        %609 = vmatprep.subr.bf16.mxu0 0
        %610 = vmatpush1.bf16.msra.mxu0 0
        %611 = vmatprep.subr.bf16.mxu0 0
        %612 = vmatpush1.bf16.msra.mxu0 0
        %613 = vmatprep.subr.bf16.mxu0 0
        %614 = vmatpush1.bf16.msra.mxu0 0
        %615 = vmatprep.subr.bf16.mxu0 0
        %616 = vmatpush1.bf16.msra.mxu0 0
        %617 = vmatprep.subr.bf16.mxu0 0
        %618 = vmatpush1.bf16.msra.mxu0 0
        %619 = vmatprep.subr.bf16.mxu0 0
        %620 = vmatpush1.bf16.msra.mxu0 0
        %621 = vmatprep.mubr.bf16.mxu0 0
        %622 = vmatmul.mubr.bf16.gmra.mrb[0].mxu0 %v583
        %v623 = vpop.f32.mrb[0].mxu0
        %v624 = vadd.f32 0.0, %v623
        %v625 = vpop.f32.mrb[0].mxu0
        %v626 = vpop.f32.mrb[0].mxu0
        %v627 = vpop.f32.mrb[0].mxu0
        %628 = vdwg.mxu0
        %v629 = vld [vmem:[#allocation2] sm:$0xff]
        %v630 = vpack.c.bf16 %v624, %v624
        %v631 = vld [vmem:[%s7] sm:$0xf]
        %v633 = vsel %vm521, %v630, 0
        %v636 = vsel %vm585, %v631, 0
        %638 = vmatprep.subr.bf16.mxu0 0
        %639 = vmatpush1.bf16.msra.mxu0 %v636
        %640 = vmatprep.subr.bf16.mxu0 0
        %641 = vmatpush1.bf16.msra.mxu0 0
        %642 = vmatprep.subr.bf16.mxu0 0
        %643 = vmatpush1.bf16.msra.mxu0 0
        %644 = vmatprep.subr.bf16.mxu0 0
        %645 = vmatpush1.bf16.msra.mxu0 0
        %646 = vmatprep.subr.bf16.mxu0 0
        %647 = vmatpush1.bf16.msra.mxu0 0
        %648 = vmatprep.subr.bf16.mxu0 0
        %649 = vmatpush1.bf16.msra.mxu0 0
        %650 = vmatprep.subr.bf16.mxu0 0
        %651 = vmatpush1.bf16.msra.mxu0 0
        %652 = vmatprep.subr.bf16.mxu0 0
        %653 = vmatpush1.bf16.msra.mxu0 0
        %654 = vmatprep.subr.bf16.mxu0 0
        %655 = vmatpush1.bf16.msra.mxu0 0
        %656 = vmatprep.subr.bf16.mxu0 0
        %657 = vmatpush1.bf16.msra.mxu0 0
        %658 = vmatprep.subr.bf16.mxu0 0
        %659 = vmatpush1.bf16.msra.mxu0 0
        %660 = vmatprep.subr.bf16.mxu0 0
        %661 = vmatpush1.bf16.msra.mxu0 0
        %662 = vmatprep.subr.bf16.mxu0 0
        %663 = vmatpush1.bf16.msra.mxu0 0
        %664 = vmatprep.subr.bf16.mxu0 0
        %665 = vmatpush1.bf16.msra.mxu0 0
        %666 = vmatprep.subr.bf16.mxu0 0
        %667 = vmatpush1.bf16.msra.mxu0 0
        %668 = vmatprep.subr.bf16.mxu0 0
        %669 = vmatpush1.bf16.msra.mxu0 0
        %670 = vmatprep.mubr.bf16.mxu0 0
        %671 = vmatmul.mubr.bf16.gmra.mrb[0].mxu0 %v633
        %v672 = vpop.f32.mrb[0].mxu0
        %v673 = vadd.f32 0.0, %v672
        %v674 = vpop.f32.mrb[0].mxu0
        %v675 = vpop.f32.mrb[0].mxu0
        %v676 = vpop.f32.mrb[0].mxu0
        %677 = vdwg.mxu0
        %v678 = vadd.f32 %v629, %v673
        %679 = vst.msk [vmem:[#allocation2] sm:$0xff] %vm361, %v678
        %s680 = scalar_lea.vmem %s5, 16
        %v681 = vld [vmem:[%s680] sm:$0xf]
        %v682 = vld [vmem:[%s680 + $0x4] sm:$0xf]
        %v683 = vld [vmem:[%s680 + $0x8] sm:$0xf]
        %v684 = vld [vmem:[%s680 + $0xc] sm:$0xf]
        %s685 = scalar_lea.vmem %s6, 16
        %v686 = vld [vmem:[%s685] sm:$0xf]
        %v687 = vld [vmem:[%s685 + $0x4] sm:$0xf]
        %v688 = vld [vmem:[%s685 + $0x8] sm:$0xf]
        %v689 = vld [vmem:[%s685 + $0xc] sm:$0xf]
        %v694 = vunpack.c.l.b16 %v686
        %v695 = vunpack.c.l.b16 %v687
        %v696 = vunpack.c.l.b16 %v688
        %v697 = vunpack.c.l.b16 %v689
        %v698 = vpack.c.b16 %v695, %v694
        %v699 = vpack.c.b16 %v697, %v696
        %702 = vmatprep.subr.bf16.mxu0 0
        %703 = vmatpush1.bf16.msra.mxu0 %v698
        %704 = vmatprep.subr.bf16.mxu0 0
        %705 = vmatpush1.bf16.msra.mxu0 %v699
        %706 = vmatprep.subr.bf16.mxu0 0
        %707 = vmatpush1.bf16.msra.mxu0 0
        %708 = vmatprep.subr.bf16.mxu0 0
        %709 = vmatpush1.bf16.msra.mxu0 0
        %710 = vmatprep.subr.bf16.mxu0 0
        %711 = vmatpush1.bf16.msra.mxu0 0
        %712 = vmatprep.subr.bf16.mxu0 0
        %713 = vmatpush1.bf16.msra.mxu0 0
        %714 = vmatprep.subr.bf16.mxu0 0
        %715 = vmatpush1.bf16.msra.mxu0 0
        %716 = vmatprep.subr.bf16.mxu0 0
        %717 = vmatpush1.bf16.msra.mxu0 0
        %718 = vmatprep.subr.bf16.mxu0 0
        %719 = vmatpush1.bf16.msra.mxu0 0
        %720 = vmatprep.subr.bf16.mxu0 0
        %721 = vmatpush1.bf16.msra.mxu0 0
        %722 = vmatprep.subr.bf16.mxu0 0
        %723 = vmatpush1.bf16.msra.mxu0 0
        %724 = vmatprep.subr.bf16.mxu0 0
        %725 = vmatpush1.bf16.msra.mxu0 0
        %726 = vmatprep.subr.bf16.mxu0 0
        %727 = vmatpush1.bf16.msra.mxu0 0
        %728 = vmatprep.subr.bf16.mxu0 0
        %729 = vmatpush1.bf16.msra.mxu0 0
        %730 = vmatprep.subr.bf16.mxu0 0
        %731 = vmatpush1.bf16.msra.mxu0 0
        %732 = vmatprep.subr.bf16.mxu0 0
        %733 = vmatpush1.bf16.msra.mxu0 0
        %734 = vmatprep.mubr.bf16.mxu0 0
        %735 = vmatmul.mubr.bf16.gmra.mrb[0].mxu0 %v412
        %v736 = vpop.f32.mrb[0].mxu0
        %v737 = vadd.f32 0.0, %v736
        %v738 = vpop.f32.mrb[0].mxu0
        %v739 = vpop.f32.mrb[0].mxu0
        %v740 = vpop.f32.mrb[0].mxu0
        %741 = vdwg.mxu0
        %v746 = vunpack.c.l.b16 %v681
        %v747 = vunpack.c.l.b16 %v682
        %v748 = vunpack.c.l.b16 %v683
        %v749 = vunpack.c.l.b16 %v684
        %v750 = vpack.c.b16 %v747, %v746
        %v751 = vpack.c.b16 %v749, %v748
        %754 = vmatprep.subr.bf16.mxu0 0
        %755 = vmatpush1.bf16.msra.mxu0 %v750
        %756 = vmatprep.subr.bf16.mxu0 0
        %757 = vmatpush1.bf16.msra.mxu0 %v751
        %758 = vmatprep.subr.bf16.mxu0 0
        %759 = vmatpush1.bf16.msra.mxu0 0
        %760 = vmatprep.subr.bf16.mxu0 0
        %761 = vmatpush1.bf16.msra.mxu0 0
        %762 = vmatprep.subr.bf16.mxu0 0
        %763 = vmatpush1.bf16.msra.mxu0 0
        %764 = vmatprep.subr.bf16.mxu0 0
        %765 = vmatpush1.bf16.msra.mxu0 0
        %766 = vmatprep.subr.bf16.mxu0 0
        %767 = vmatpush1.bf16.msra.mxu0 0
        %768 = vmatprep.subr.bf16.mxu0 0
        %769 = vmatpush1.bf16.msra.mxu0 0
        %770 = vmatprep.subr.bf16.mxu0 0
        %771 = vmatpush1.bf16.msra.mxu0 0
        %772 = vmatprep.subr.bf16.mxu0 0
        %773 = vmatpush1.bf16.msra.mxu0 0
        %774 = vmatprep.subr.bf16.mxu0 0
        %775 = vmatpush1.bf16.msra.mxu0 0
        %776 = vmatprep.subr.bf16.mxu0 0
        %777 = vmatpush1.bf16.msra.mxu0 0
        %778 = vmatprep.subr.bf16.mxu0 0
        %779 = vmatpush1.bf16.msra.mxu0 0
        %780 = vmatprep.subr.bf16.mxu0 0
        %781 = vmatpush1.bf16.msra.mxu0 0
        %782 = vmatprep.subr.bf16.mxu0 0
        %783 = vmatpush1.bf16.msra.mxu0 0
        %784 = vmatprep.subr.bf16.mxu0 0
        %785 = vmatpush1.bf16.msra.mxu0 0
        %786 = vmatprep.mubr.bf16.mxu0 0
        %787 = vmatmul.mubr.bf16.gmra.mrb[0].mxu0 %v467
        %v788 = vpop.f32.mrb[0].mxu0
        %v789 = vadd.f32 %v737, %v788
        %v790 = vpop.f32.mrb[0].mxu0
        %v791 = vpop.f32.mrb[0].mxu0
        %v792 = vpop.f32.mrb[0].mxu0
        %793 = vdwg.mxu0
        %s794 = scalar_lea.vmem %s4, 1
        %v795 = vld [vmem:[%s794] sm:$0x1]
        %v797 = vlaneseq
        %v798 = vshrl.u32 %v797, 7
        %v799 = vsub.s32 0, %v798
        %v800 = vrot.slane %v795, %v799
        %v802 = vadd.f32 %v789, %v800
        %v803 = vpack.c.bf16 %v802, %v802
        %805 = vrot.lane.b32.xlu0 %v803, 120
        %v806 = vpop.permute.xlu0 %805
        %v808 = vsel %vm521, %v803, 0
        %v811 = vsel %vm521, %v806, 0
        %813 = vmatprep.subr.bf16.mxu0 0
        %814 = vmatpush1.bf16.xpose.msra.mxu0 %v811
        %815 = vmatprep.subr.bf16.mxu0 0
        %816 = vmatpush1.bf16.xpose.msra.mxu0 0
        %817 = vmatprep.subr.bf16.mxu0 0
        %818 = vmatpush1.bf16.xpose.msra.mxu0 0
        %819 = vmatprep.subr.bf16.mxu0 0
        %820 = vmatpush1.bf16.xpose.msra.mxu0 0
        %821 = vmatprep.subr.bf16.mxu0 0
        %822 = vmatpush1.bf16.xpose.msra.mxu0 0
        %823 = vmatprep.subr.bf16.mxu0 0
        %824 = vmatpush1.bf16.xpose.msra.mxu0 0
        %825 = vmatprep.subr.bf16.mxu0 0
        %826 = vmatpush1.bf16.xpose.msra.mxu0 0
        %827 = vmatprep.subr.bf16.mxu0 0
        %828 = vmatpush1.bf16.xpose.msra.mxu0 0
        %829 = vmatprep.subr.bf16.mxu0 0
        %830 = vmatpush1.bf16.xpose.msra.mxu0 0
        %831 = vmatprep.subr.bf16.mxu0 0
        %832 = vmatpush1.bf16.xpose.msra.mxu0 0
        %833 = vmatprep.subr.bf16.mxu0 0
        %834 = vmatpush1.bf16.xpose.msra.mxu0 0
        %835 = vmatprep.subr.bf16.mxu0 0
        %836 = vmatpush1.bf16.xpose.msra.mxu0 0
        %837 = vmatprep.subr.bf16.mxu0 0
        %838 = vmatpush1.bf16.xpose.msra.mxu0 0
        %839 = vmatprep.subr.bf16.mxu0 0
        %840 = vmatpush1.bf16.xpose.msra.mxu0 0
        %841 = vmatprep.subr.bf16.mxu0 0
        %842 = vmatpush1.bf16.xpose.msra.mxu0 0
        %843 = vmatprep.subr.bf16.mxu0 0
        %844 = vmatpush1.bf16.xpose.msra.mxu0 0
        %845 = vmatprep.mubr.bf16.mxu0 0
        %846 = vmatmul.mubr.bf16.gmra.mrb[0].mxu0 %v808
        %v847 = vpop.f32.mrb[0].mxu0
        %v848 = vadd.f32 0.0, %v847
        %v849 = vpop.f32.mrb[0].mxu0
        %v850 = vpop.f32.mrb[0].mxu0
        %v851 = vpop.f32.mrb[0].mxu0
        %852 = vdwg.mxu0
        %v853 = vsel %vm521, %v848, -inf
        %854 = vmax.xlane.f32.xlu0 %v853
        %v855 = vpop.xlane.xlu0 %854
        %v856 = vsub.f32 %v848, %v855
        %v857 = vmul.f32 %v856, 1.442695
        %v858 = vpow.pop %v857
        %v859 = vsel %vm521, %v858, 0.0
        %860 = vadd.xlane.f32.xlu0 %v859
        %v861 = vpop.xlane.xlu0 %860
        %v862 = vrcp.pop %v861
        %v863 = vmul.f32 %v858, %v862
        %v864 = vpack.c.bf16 %v863, %v863
        %865 = vrot.lane.b32.xlu0 %v803, 112
        %v866 = vpop.permute.xlu0 %865
        %v868 = vsel %vm521, %v864, 0
        %v871 = vsel %vm585, %v866, 0
        %873 = vmatprep.subr.bf16.mxu0 0
        %874 = vmatpush1.bf16.msra.mxu0 %v871
        %875 = vmatprep.subr.bf16.mxu0 0
        %876 = vmatpush1.bf16.msra.mxu0 0
        %877 = vmatprep.subr.bf16.mxu0 0
        %878 = vmatpush1.bf16.msra.mxu0 0
        %879 = vmatprep.subr.bf16.mxu0 0
        %880 = vmatpush1.bf16.msra.mxu0 0
        %881 = vmatprep.subr.bf16.mxu0 0
        %882 = vmatpush1.bf16.msra.mxu0 0
        %883 = vmatprep.subr.bf16.mxu0 0
        %884 = vmatpush1.bf16.msra.mxu0 0
        %885 = vmatprep.subr.bf16.mxu0 0
        %886 = vmatpush1.bf16.msra.mxu0 0
        %887 = vmatprep.subr.bf16.mxu0 0
        %888 = vmatpush1.bf16.msra.mxu0 0
        %889 = vmatprep.subr.bf16.mxu0 0
        %890 = vmatpush1.bf16.msra.mxu0 0
        %891 = vmatprep.subr.bf16.mxu0 0
        %892 = vmatpush1.bf16.msra.mxu0 0
        %893 = vmatprep.subr.bf16.mxu0 0
        %894 = vmatpush1.bf16.msra.mxu0 0
        %895 = vmatprep.subr.bf16.mxu0 0
        %896 = vmatpush1.bf16.msra.mxu0 0
        %897 = vmatprep.subr.bf16.mxu0 0
        %898 = vmatpush1.bf16.msra.mxu0 0
        %899 = vmatprep.subr.bf16.mxu0 0
        %900 = vmatpush1.bf16.msra.mxu0 0
        %901 = vmatprep.subr.bf16.mxu0 0
        %902 = vmatpush1.bf16.msra.mxu0 0
        %903 = vmatprep.subr.bf16.mxu0 0
        %904 = vmatpush1.bf16.msra.mxu0 0
        %905 = vmatprep.mubr.bf16.mxu0 0
        %906 = vmatmul.mubr.bf16.gmra.mrb[0].mxu0 %v868
        %v907 = vpop.f32.mrb[0].mxu0
        %v908 = vadd.f32 0.0, %v907
        %v909 = vpop.f32.mrb[0].mxu0
        %v910 = vpop.f32.mrb[0].mxu0
        %v911 = vpop.f32.mrb[0].mxu0
        %912 = vdwg.mxu0
        %v913 = vld [vmem:[#allocation2] sm:$0xff]
        %v914 = vpack.c.bf16 %v908, %v908
        %s915 = scalar_lea.vmem %s7, 4
        %v916 = vld [vmem:[%s915] sm:$0xf]
        %v918 = vsel %vm521, %v914, 0
        %v921 = vsel %vm585, %v916, 0
        %923 = vmatprep.subr.bf16.mxu0 0
        %924 = vmatpush1.bf16.msra.mxu0 %v921
        %925 = vmatprep.subr.bf16.mxu0 0
        %926 = vmatpush1.bf16.msra.mxu0 0
        %927 = vmatprep.subr.bf16.mxu0 0
        %928 = vmatpush1.bf16.msra.mxu0 0
        %929 = vmatprep.subr.bf16.mxu0 0
        %930 = vmatpush1.bf16.msra.mxu0 0
        %931 = vmatprep.subr.bf16.mxu0 0
        %932 = vmatpush1.bf16.msra.mxu0 0
        %933 = vmatprep.subr.bf16.mxu0 0
        %934 = vmatpush1.bf16.msra.mxu0 0
        %935 = vmatprep.subr.bf16.mxu0 0
        %936 = vmatpush1.bf16.msra.mxu0 0
        %937 = vmatprep.subr.bf16.mxu0 0
        %938 = vmatpush1.bf16.msra.mxu0 0
        %939 = vmatprep.subr.bf16.mxu0 0
        %940 = vmatpush1.bf16.msra.mxu0 0
        %941 = vmatprep.subr.bf16.mxu0 0
        %942 = vmatpush1.bf16.msra.mxu0 0
        %943 = vmatprep.subr.bf16.mxu0 0
        %944 = vmatpush1.bf16.msra.mxu0 0
        %945 = vmatprep.subr.bf16.mxu0 0
        %946 = vmatpush1.bf16.msra.mxu0 0
        %947 = vmatprep.subr.bf16.mxu0 0
        %948 = vmatpush1.bf16.msra.mxu0 0
        %949 = vmatprep.subr.bf16.mxu0 0
        %950 = vmatpush1.bf16.msra.mxu0 0
        %951 = vmatprep.subr.bf16.mxu0 0
        %952 = vmatpush1.bf16.msra.mxu0 0
        %953 = vmatprep.subr.bf16.mxu0 0
        %954 = vmatpush1.bf16.msra.mxu0 0
        %955 = vmatprep.mubr.bf16.mxu0 0
        %956 = vmatmul.mubr.bf16.gmra.mrb[0].mxu0 %v918
        %v957 = vpop.f32.mrb[0].mxu0
        %v958 = vadd.f32 0.0, %v957
        %v959 = vpop.f32.mrb[0].mxu0
        %v960 = vpop.f32.mrb[0].mxu0
        %v961 = vpop.f32.mrb[0].mxu0
        %962 = vdwg.mxu0
        %v963 = vadd.f32 %v913, %v958
        %964 = vst.msk [vmem:[#allocation2] sm:$0xff] %vm361, %v963
        %s965 = scalar_lea.vmem %s5, 32
        %v966 = vld [vmem:[%s965] sm:$0xf]
        %v967 = vld [vmem:[%s965 + $0x4] sm:$0xf]
        %v968 = vld [vmem:[%s965 + $0x8] sm:$0xf]
        %v969 = vld [vmem:[%s965 + $0xc] sm:$0xf]
        %s970 = scalar_lea.vmem %s6, 32
        %v971 = vld [vmem:[%s970] sm:$0xf]
        %v972 = vld [vmem:[%s970 + $0x4] sm:$0xf]
        %v973 = vld [vmem:[%s970 + $0x8] sm:$0xf]
        %v974 = vld [vmem:[%s970 + $0xc] sm:$0xf]
        %v979 = vunpack.c.l.b16 %v971
        %v980 = vunpack.c.l.b16 %v972
        %v981 = vunpack.c.l.b16 %v973
        %v982 = vunpack.c.l.b16 %v974
        %v983 = vpack.c.b16 %v980, %v979
        %v984 = vpack.c.b16 %v982, %v981
        %987 = vmatprep.subr.bf16.mxu0 0
        %988 = vmatpush1.bf16.msra.mxu0 %v983
        %989 = vmatprep.subr.bf16.mxu0 0
        %990 = vmatpush1.bf16.msra.mxu0 %v984
        %991 = vmatprep.subr.bf16.mxu0 0
        %992 = vmatpush1.bf16.msra.mxu0 0
        %993 = vmatprep.subr.bf16.mxu0 0
        %994 = vmatpush1.bf16.msra.mxu0 0
        %995 = vmatprep.subr.bf16.mxu0 0
        %996 = vmatpush1.bf16.msra.mxu0 0
        %997 = vmatprep.subr.bf16.mxu0 0
        %998 = vmatpush1.bf16.msra.mxu0 0
        %999 = vmatprep.subr.bf16.mxu0 0
        %1000 = vmatpush1.bf16.msra.mxu0 0
        %1001 = vmatprep.subr.bf16.mxu0 0
        %1002 = vmatpush1.bf16.msra.mxu0 0
        %1003 = vmatprep.subr.bf16.mxu0 0
        %1004 = vmatpush1.bf16.msra.mxu0 0
        %1005 = vmatprep.subr.bf16.mxu0 0
        %1006 = vmatpush1.bf16.msra.mxu0 0
        %1007 = vmatprep.subr.bf16.mxu0 0
        %1008 = vmatpush1.bf16.msra.mxu0 0
        %1009 = vmatprep.subr.bf16.mxu0 0
        %1010 = vmatpush1.bf16.msra.mxu0 0
        %1011 = vmatprep.subr.bf16.mxu0 0
        %1012 = vmatpush1.bf16.msra.mxu0 0
        %1013 = vmatprep.subr.bf16.mxu0 0
        %1014 = vmatpush1.bf16.msra.mxu0 0
        %1015 = vmatprep.subr.bf16.mxu0 0
        %1016 = vmatpush1.bf16.msra.mxu0 0
        %1017 = vmatprep.subr.bf16.mxu0 0
        %1018 = vmatpush1.bf16.msra.mxu0 0
        %1019 = vmatprep.mubr.bf16.mxu0 0
        %1020 = vmatmul.mubr.bf16.gmra.mrb[0].mxu0 %v412
        %v1021 = vpop.f32.mrb[0].mxu0
        %v1022 = vadd.f32 0.0, %v1021
        %v1023 = vpop.f32.mrb[0].mxu0
        %v1024 = vpop.f32.mrb[0].mxu0
        %v1025 = vpop.f32.mrb[0].mxu0
        %1026 = vdwg.mxu0
        %v1031 = vunpack.c.l.b16 %v966
        %v1032 = vunpack.c.l.b16 %v967
        %v1033 = vunpack.c.l.b16 %v968
        %v1034 = vunpack.c.l.b16 %v969
        %v1035 = vpack.c.b16 %v1032, %v1031
        %v1036 = vpack.c.b16 %v1034, %v1033
        %1039 = vmatprep.subr.bf16.mxu0 0
        %1040 = vmatpush1.bf16.msra.mxu0 %v1035
        %1041 = vmatprep.subr.bf16.mxu0 0
        %1042 = vmatpush1.bf16.msra.mxu0 %v1036
        %1043 = vmatprep.subr.bf16.mxu0 0
        %1044 = vmatpush1.bf16.msra.mxu0 0
        %1045 = vmatprep.subr.bf16.mxu0 0
        %1046 = vmatpush1.bf16.msra.mxu0 0
        %1047 = vmatprep.subr.bf16.mxu0 0
        %1048 = vmatpush1.bf16.msra.mxu0 0
        %1049 = vmatprep.subr.bf16.mxu0 0
        %1050 = vmatpush1.bf16.msra.mxu0 0
        %1051 = vmatprep.subr.bf16.mxu0 0
        %1052 = vmatpush1.bf16.msra.mxu0 0
        %1053 = vmatprep.subr.bf16.mxu0 0
        %1054 = vmatpush1.bf16.msra.mxu0 0
        %1055 = vmatprep.subr.bf16.mxu0 0
        %1056 = vmatpush1.bf16.msra.mxu0 0
        %1057 = vmatprep.subr.bf16.mxu0 0
        %1058 = vmatpush1.bf16.msra.mxu0 0
        %1059 = vmatprep.subr.bf16.mxu0 0
        %1060 = vmatpush1.bf16.msra.mxu0 0
        %1061 = vmatprep.subr.bf16.mxu0 0
        %1062 = vmatpush1.bf16.msra.mxu0 0
        %1063 = vmatprep.subr.bf16.mxu0 0
        %1064 = vmatpush1.bf16.msra.mxu0 0
        %1065 = vmatprep.subr.bf16.mxu0 0
        %1066 = vmatpush1.bf16.msra.mxu0 0
        %1067 = vmatprep.subr.bf16.mxu0 0
        %1068 = vmatpush1.bf16.msra.mxu0 0
        %1069 = vmatprep.subr.bf16.mxu0 0
        %1070 = vmatpush1.bf16.msra.mxu0 0
        %1071 = vmatprep.mubr.bf16.mxu0 0
        %1072 = vmatmul.mubr.bf16.gmra.mrb[0].mxu0 %v467
        %v1073 = vpop.f32.mrb[0].mxu0
        %v1074 = vadd.f32 %v1022, %v1073
        %v1075 = vpop.f32.mrb[0].mxu0
        %v1076 = vpop.f32.mrb[0].mxu0
        %v1077 = vpop.f32.mrb[0].mxu0
        %1078 = vdwg.mxu0
        %s1079 = scalar_lea.vmem %s4, 2
        %v1080 = vld [vmem:[%s1079] sm:$0x1]
        %v1082 = vlaneseq
        %v1083 = vshrl.u32 %v1082, 7
        %v1084 = vsub.s32 0, %v1083
        %v1085 = vrot.slane %v1080, %v1084
        %v1087 = vadd.f32 %v1074, %v1085
        %v1088 = vpack.c.bf16 %v1087, %v1087
        %1090 = vrot.lane.b32.xlu0 %v1088, 120
        %v1091 = vpop.permute.xlu0 %1090
        %v1093 = vsel %vm521, %v1088, 0
        %v1096 = vsel %vm521, %v1091, 0
        %1098 = vmatprep.subr.bf16.mxu0 0
        %1099 = vmatpush1.bf16.xpose.msra.mxu0 %v1096
        %1100 = vmatprep.subr.bf16.mxu0 0
        %1101 = vmatpush1.bf16.xpose.msra.mxu0 0
        %1102 = vmatprep.subr.bf16.mxu0 0
        %1103 = vmatpush1.bf16.xpose.msra.mxu0 0
        %1104 = vmatprep.subr.bf16.mxu0 0
        %1105 = vmatpush1.bf16.xpose.msra.mxu0 0
        %1106 = vmatprep.subr.bf16.mxu0 0
        %1107 = vmatpush1.bf16.xpose.msra.mxu0 0
        %1108 = vmatprep.subr.bf16.mxu0 0
        %1109 = vmatpush1.bf16.xpose.msra.mxu0 0
        %1110 = vmatprep.subr.bf16.mxu0 0
        %1111 = vmatpush1.bf16.xpose.msra.mxu0 0
        %1112 = vmatprep.subr.bf16.mxu0 0
        %1113 = vmatpush1.bf16.xpose.msra.mxu0 0
        %1114 = vmatprep.subr.bf16.mxu0 0
        %1115 = vmatpush1.bf16.xpose.msra.mxu0 0
        %1116 = vmatprep.subr.bf16.mxu0 0
        %1117 = vmatpush1.bf16.xpose.msra.mxu0 0
        %1118 = vmatprep.subr.bf16.mxu0 0
        %1119 = vmatpush1.bf16.xpose.msra.mxu0 0
        %1120 = vmatprep.subr.bf16.mxu0 0
        %1121 = vmatpush1.bf16.xpose.msra.mxu0 0
        %1122 = vmatprep.subr.bf16.mxu0 0
        %1123 = vmatpush1.bf16.xpose.msra.mxu0 0
        %1124 = vmatprep.subr.bf16.mxu0 0
        %1125 = vmatpush1.bf16.xpose.msra.mxu0 0
        %1126 = vmatprep.subr.bf16.mxu0 0
        %1127 = vmatpush1.bf16.xpose.msra.mxu0 0
        %1128 = vmatprep.subr.bf16.mxu0 0
        %1129 = vmatpush1.bf16.xpose.msra.mxu0 0
        %1130 = vmatprep.mubr.bf16.mxu0 0
        %1131 = vmatmul.mubr.bf16.gmra.mrb[0].mxu0 %v1093
        %v1132 = vpop.f32.mrb[0].mxu0
        %v1133 = vadd.f32 0.0, %v1132
        %v1134 = vpop.f32.mrb[0].mxu0
        %v1135 = vpop.f32.mrb[0].mxu0
        %v1136 = vpop.f32.mrb[0].mxu0
        %1137 = vdwg.mxu0
        %v1138 = vsel %vm521, %v1133, -inf
        %1139 = vmax.xlane.f32.xlu0 %v1138
        %v1140 = vpop.xlane.xlu0 %1139
        %v1141 = vsub.f32 %v1133, %v1140
        %v1142 = vmul.f32 %v1141, 1.442695
        %v1143 = vpow.pop %v1142
        %v1144 = vsel %vm521, %v1143, 0.0
        %1145 = vadd.xlane.f32.xlu0 %v1144
        %v1146 = vpop.xlane.xlu0 %1145
        %v1147 = vrcp.pop %v1146
        %v1148 = vmul.f32 %v1143, %v1147
        %v1149 = vpack.c.bf16 %v1148, %v1148
        %1150 = vrot.lane.b32.xlu0 %v1088, 112
        %v1151 = vpop.permute.xlu0 %1150
        %v1153 = vsel %vm521, %v1149, 0
        %v1156 = vsel %vm585, %v1151, 0
        %1158 = vmatprep.subr.bf16.mxu0 0
        %1159 = vmatpush1.bf16.msra.mxu0 %v1156
        %1160 = vmatprep.subr.bf16.mxu0 0
        %1161 = vmatpush1.bf16.msra.mxu0 0
        %1162 = vmatprep.subr.bf16.mxu0 0
        %1163 = vmatpush1.bf16.msra.mxu0 0
        %1164 = vmatprep.subr.bf16.mxu0 0
        %1165 = vmatpush1.bf16.msra.mxu0 0
        %1166 = vmatprep.subr.bf16.mxu0 0
        %1167 = vmatpush1.bf16.msra.mxu0 0
        %1168 = vmatprep.subr.bf16.mxu0 0
        %1169 = vmatpush1.bf16.msra.mxu0 0
        %1170 = vmatprep.subr.bf16.mxu0 0
        %1171 = vmatpush1.bf16.msra.mxu0 0
        %1172 = vmatprep.subr.bf16.mxu0 0
        %1173 = vmatpush1.bf16.msra.mxu0 0
        %1174 = vmatprep.subr.bf16.mxu0 0
        %1175 = vmatpush1.bf16.msra.mxu0 0
        %1176 = vmatprep.subr.bf16.mxu0 0
        %1177 = vmatpush1.bf16.msra.mxu0 0
        %1178 = vmatprep.subr.bf16.mxu0 0
        %1179 = vmatpush1.bf16.msra.mxu0 0
        %1180 = vmatprep.subr.bf16.mxu0 0
        %1181 = vmatpush1.bf16.msra.mxu0 0
        %1182 = vmatprep.subr.bf16.mxu0 0
        %1183 = vmatpush1.bf16.msra.mxu0 0
        %1184 = vmatprep.subr.bf16.mxu0 0
        %1185 = vmatpush1.bf16.msra.mxu0 0
        %1186 = vmatprep.subr.bf16.mxu0 0
        %1187 = vmatpush1.bf16.msra.mxu0 0
        %1188 = vmatprep.subr.bf16.mxu0 0
        %1189 = vmatpush1.bf16.msra.mxu0 0
        %1190 = vmatprep.mubr.bf16.mxu0 0
        %1191 = vmatmul.mubr.bf16.gmra.mrb[0].mxu0 %v1153
        %v1192 = vpop.f32.mrb[0].mxu0
        %v1193 = vadd.f32 0.0, %v1192
        %v1194 = vpop.f32.mrb[0].mxu0
        %v1195 = vpop.f32.mrb[0].mxu0
        %v1196 = vpop.f32.mrb[0].mxu0
        %1197 = vdwg.mxu0
        %v1198 = vld [vmem:[#allocation2] sm:$0xff]
        %v1199 = vpack.c.bf16 %v1193, %v1193
        %s1200 = scalar_lea.vmem %s7, 8
        %v1201 = vld [vmem:[%s1200] sm:$0xf]
        %v1203 = vsel %vm521, %v1199, 0
        %v1206 = vsel %vm585, %v1201, 0
        %1208 = vmatprep.subr.bf16.mxu0 0
        %1209 = vmatpush1.bf16.msra.mxu0 %v1206
        %1210 = vmatprep.subr.bf16.mxu0 0
        %1211 = vmatpush1.bf16.msra.mxu0 0
        %1212 = vmatprep.subr.bf16.mxu0 0
        %1213 = vmatpush1.bf16.msra.mxu0 0
        %1214 = vmatprep.subr.bf16.mxu0 0
        %1215 = vmatpush1.bf16.msra.mxu0 0
        %1216 = vmatprep.subr.bf16.mxu0 0
        %1217 = vmatpush1.bf16.msra.mxu0 0
        %1218 = vmatprep.subr.bf16.mxu0 0
        %1219 = vmatpush1.bf16.msra.mxu0 0
        %1220 = vmatprep.subr.bf16.mxu0 0
        %1221 = vmatpush1.bf16.msra.mxu0 0
        %1222 = vmatprep.subr.bf16.mxu0 0
        %1223 = vmatpush1.bf16.msra.mxu0 0
        %1224 = vmatprep.subr.bf16.mxu0 0
        %1225 = vmatpush1.bf16.msra.mxu0 0
        %1226 = vmatprep.subr.bf16.mxu0 0
        %1227 = vmatpush1.bf16.msra.mxu0 0
        %1228 = vmatprep.subr.bf16.mxu0 0
        %1229 = vmatpush1.bf16.msra.mxu0 0
        %1230 = vmatprep.subr.bf16.mxu0 0
        %1231 = vmatpush1.bf16.msra.mxu0 0
        %1232 = vmatprep.subr.bf16.mxu0 0
        %1233 = vmatpush1.bf16.msra.mxu0 0
        %1234 = vmatprep.subr.bf16.mxu0 0
        %1235 = vmatpush1.bf16.msra.mxu0 0
        %1236 = vmatprep.subr.bf16.mxu0 0
        %1237 = vmatpush1.bf16.msra.mxu0 0
        %1238 = vmatprep.subr.bf16.mxu0 0
        %1239 = vmatpush1.bf16.msra.mxu0 0
        %1240 = vmatprep.mubr.bf16.mxu0 0
        %1241 = vmatmul.mubr.bf16.gmra.mrb[0].mxu0 %v1203
        %v1242 = vpop.f32.mrb[0].mxu0
        %v1243 = vadd.f32 0.0, %v1242
        %v1244 = vpop.f32.mrb[0].mxu0
        %v1245 = vpop.f32.mrb[0].mxu0
        %v1246 = vpop.f32.mrb[0].mxu0
        %1247 = vdwg.mxu0
        %v1248 = vadd.f32 %v1198, %v1243
        %1249 = vst.msk [vmem:[#allocation2] sm:$0xff] %vm361, %v1248
        %s1250 = scalar_lea.vmem %s5, 48
        %v1251 = vld [vmem:[%s1250] sm:$0xf]
        %v1252 = vld [vmem:[%s1250 + $0x4] sm:$0xf]
        %v1253 = vld [vmem:[%s1250 + $0x8] sm:$0xf]
        %v1254 = vld [vmem:[%s1250 + $0xc] sm:$0xf]
        %s1255 = scalar_lea.vmem %s6, 48
        %v1256 = vld [vmem:[%s1255] sm:$0xf]
        %v1257 = vld [vmem:[%s1255 + $0x4] sm:$0xf]
        %v1258 = vld [vmem:[%s1255 + $0x8] sm:$0xf]
        %v1259 = vld [vmem:[%s1255 + $0xc] sm:$0xf]
        %v1264 = vunpack.c.l.b16 %v1256
        %v1265 = vunpack.c.l.b16 %v1257
        %v1266 = vunpack.c.l.b16 %v1258
        %v1267 = vunpack.c.l.b16 %v1259
        %v1268 = vpack.c.b16 %v1265, %v1264
        %v1269 = vpack.c.b16 %v1267, %v1266
        %1272 = vmatprep.subr.bf16.mxu0 0
        %1273 = vmatpush1.bf16.msra.mxu0 %v1268
        %1274 = vmatprep.subr.bf16.mxu0 0
        %1275 = vmatpush1.bf16.msra.mxu0 %v1269
        %1276 = vmatprep.subr.bf16.mxu0 0
        %1277 = vmatpush1.bf16.msra.mxu0 0
        %1278 = vmatprep.subr.bf16.mxu0 0
        %1279 = vmatpush1.bf16.msra.mxu0 0
        %1280 = vmatprep.subr.bf16.mxu0 0
        %1281 = vmatpush1.bf16.msra.mxu0 0
        %1282 = vmatprep.subr.bf16.mxu0 0
        %1283 = vmatpush1.bf16.msra.mxu0 0
        %1284 = vmatprep.subr.bf16.mxu0 0
        %1285 = vmatpush1.bf16.msra.mxu0 0
        %1286 = vmatprep.subr.bf16.mxu0 0
        %1287 = vmatpush1.bf16.msra.mxu0 0
        %1288 = vmatprep.subr.bf16.mxu0 0
        %1289 = vmatpush1.bf16.msra.mxu0 0
        %1290 = vmatprep.subr.bf16.mxu0 0
        %1291 = vmatpush1.bf16.msra.mxu0 0
        %1292 = vmatprep.subr.bf16.mxu0 0
        %1293 = vmatpush1.bf16.msra.mxu0 0
        %1294 = vmatprep.subr.bf16.mxu0 0
        %1295 = vmatpush1.bf16.msra.mxu0 0
        %1296 = vmatprep.subr.bf16.mxu0 0
        %1297 = vmatpush1.bf16.msra.mxu0 0
        %1298 = vmatprep.subr.bf16.mxu0 0
        %1299 = vmatpush1.bf16.msra.mxu0 0
        %1300 = vmatprep.subr.bf16.mxu0 0
        %1301 = vmatpush1.bf16.msra.mxu0 0
        %1302 = vmatprep.subr.bf16.mxu0 0
        %1303 = vmatpush1.bf16.msra.mxu0 0
        %1304 = vmatprep.mubr.bf16.mxu0 0
        %1305 = vmatmul.mubr.bf16.gmra.mrb[0].mxu0 %v412
        %v1306 = vpop.f32.mrb[0].mxu0
        %v1307 = vadd.f32 0.0, %v1306
        %v1308 = vpop.f32.mrb[0].mxu0
        %v1309 = vpop.f32.mrb[0].mxu0
        %v1310 = vpop.f32.mrb[0].mxu0
        %1311 = vdwg.mxu0
        %v1316 = vunpack.c.l.b16 %v1251
        %v1317 = vunpack.c.l.b16 %v1252
        %v1318 = vunpack.c.l.b16 %v1253
        %v1319 = vunpack.c.l.b16 %v1254
        %v1320 = vpack.c.b16 %v1317, %v1316
        %v1321 = vpack.c.b16 %v1319, %v1318
        %1324 = vmatprep.subr.bf16.mxu0 0
        %1325 = vmatpush1.bf16.msra.mxu0 %v1320
        %1326 = vmatprep.subr.bf16.mxu0 0
        %1327 = vmatpush1.bf16.msra.mxu0 %v1321
        %1328 = vmatprep.subr.bf16.mxu0 0
        %1329 = vmatpush1.bf16.msra.mxu0 0
        %1330 = vmatprep.subr.bf16.mxu0 0
        %1331 = vmatpush1.bf16.msra.mxu0 0
        %1332 = vmatprep.subr.bf16.mxu0 0
        %1333 = vmatpush1.bf16.msra.mxu0 0
        %1334 = vmatprep.subr.bf16.mxu0 0
        %1335 = vmatpush1.bf16.msra.mxu0 0
        %1336 = vmatprep.subr.bf16.mxu0 0
        %1337 = vmatpush1.bf16.msra.mxu0 0
        %1338 = vmatprep.subr.bf16.mxu0 0
        %1339 = vmatpush1.bf16.msra.mxu0 0
        %1340 = vmatprep.subr.bf16.mxu0 0
        %1341 = vmatpush1.bf16.msra.mxu0 0
        %1342 = vmatprep.subr.bf16.mxu0 0
        %1343 = vmatpush1.bf16.msra.mxu0 0
        %1344 = vmatprep.subr.bf16.mxu0 0
        %1345 = vmatpush1.bf16.msra.mxu0 0
        %1346 = vmatprep.subr.bf16.mxu0 0
        %1347 = vmatpush1.bf16.msra.mxu0 0
        %1348 = vmatprep.subr.bf16.mxu0 0
        %1349 = vmatpush1.bf16.msra.mxu0 0
        %1350 = vmatprep.subr.bf16.mxu0 0
        %1351 = vmatpush1.bf16.msra.mxu0 0
        %1352 = vmatprep.subr.bf16.mxu0 0
        %1353 = vmatpush1.bf16.msra.mxu0 0
        %1354 = vmatprep.subr.bf16.mxu0 0
        %1355 = vmatpush1.bf16.msra.mxu0 0
        %1356 = vmatprep.mubr.bf16.mxu0 0
        %1357 = vmatmul.mubr.bf16.gmra.mrb[0].mxu0 %v467
        %v1358 = vpop.f32.mrb[0].mxu0
        %v1359 = vadd.f32 %v1307, %v1358
        %v1360 = vpop.f32.mrb[0].mxu0
        %v1361 = vpop.f32.mrb[0].mxu0
        %v1362 = vpop.f32.mrb[0].mxu0
        %1363 = vdwg.mxu0
        %s1364 = scalar_lea.vmem %s4, 3
        %v1365 = vld [vmem:[%s1364] sm:$0x1]
        %v1367 = vlaneseq
        %v1368 = vshrl.u32 %v1367, 7
        %v1369 = vsub.s32 0, %v1368
        %v1370 = vrot.slane %v1365, %v1369
        %v1372 = vadd.f32 %v1359, %v1370
        %v1373 = vpack.c.bf16 %v1372, %v1372
        %1375 = vrot.lane.b32.xlu0 %v1373, 120
        %v1376 = vpop.permute.xlu0 %1375
        %v1378 = vsel %vm521, %v1373, 0
        %v1381 = vsel %vm521, %v1376, 0
        %1383 = vmatprep.subr.bf16.mxu0 0
        %1384 = vmatpush1.bf16.xpose.msra.mxu0 %v1381
        %1385 = vmatprep.subr.bf16.mxu0 0
        %1386 = vmatpush1.bf16.xpose.msra.mxu0 0
        %1387 = vmatprep.subr.bf16.mxu0 0
        %1388 = vmatpush1.bf16.xpose.msra.mxu0 0
        %1389 = vmatprep.subr.bf16.mxu0 0
        %1390 = vmatpush1.bf16.xpose.msra.mxu0 0
        %1391 = vmatprep.subr.bf16.mxu0 0
        %1392 = vmatpush1.bf16.xpose.msra.mxu0 0
        %1393 = vmatprep.subr.bf16.mxu0 0
        %1394 = vmatpush1.bf16.xpose.msra.mxu0 0
        %1395 = vmatprep.subr.bf16.mxu0 0
        %1396 = vmatpush1.bf16.xpose.msra.mxu0 0
        %1397 = vmatprep.subr.bf16.mxu0 0
        %1398 = vmatpush1.bf16.xpose.msra.mxu0 0
        %1399 = vmatprep.subr.bf16.mxu0 0
        %1400 = vmatpush1.bf16.xpose.msra.mxu0 0
        %1401 = vmatprep.subr.bf16.mxu0 0
        %1402 = vmatpush1.bf16.xpose.msra.mxu0 0
        %1403 = vmatprep.subr.bf16.mxu0 0
        %1404 = vmatpush1.bf16.xpose.msra.mxu0 0
        %1405 = vmatprep.subr.bf16.mxu0 0
        %1406 = vmatpush1.bf16.xpose.msra.mxu0 0
        %1407 = vmatprep.subr.bf16.mxu0 0
        %1408 = vmatpush1.bf16.xpose.msra.mxu0 0
        %1409 = vmatprep.subr.bf16.mxu0 0
        %1410 = vmatpush1.bf16.xpose.msra.mxu0 0
        %1411 = vmatprep.subr.bf16.mxu0 0
        %1412 = vmatpush1.bf16.xpose.msra.mxu0 0
        %1413 = vmatprep.subr.bf16.mxu0 0
        %1414 = vmatpush1.bf16.xpose.msra.mxu0 0
        %1415 = vmatprep.mubr.bf16.mxu0 0
        %1416 = vmatmul.mubr.bf16.gmra.mrb[0].mxu0 %v1378
        %v1417 = vpop.f32.mrb[0].mxu0
        %v1418 = vadd.f32 0.0, %v1417
        %v1419 = vpop.f32.mrb[0].mxu0
        %v1420 = vpop.f32.mrb[0].mxu0
        %v1421 = vpop.f32.mrb[0].mxu0
        %1422 = vdwg.mxu0
        %v1423 = vsel %vm521, %v1418, -inf
        %1424 = vmax.xlane.f32.xlu0 %v1423
        %v1425 = vpop.xlane.xlu0 %1424
        %v1426 = vsub.f32 %v1418, %v1425
        %v1427 = vmul.f32 %v1426, 1.442695
        %v1428 = vpow.pop %v1427
        %v1429 = vsel %vm521, %v1428, 0.0
        %1430 = vadd.xlane.f32.xlu0 %v1429
        %v1431 = vpop.xlane.xlu0 %1430
        %v1432 = vrcp.pop %v1431
        %v1433 = vmul.f32 %v1428, %v1432
        %v1434 = vpack.c.bf16 %v1433, %v1433
        %1435 = vrot.lane.b32.xlu0 %v1373, 112
        %v1436 = vpop.permute.xlu0 %1435
        %v1438 = vsel %vm521, %v1434, 0
        %v1441 = vsel %vm585, %v1436, 0
        %1443 = vmatprep.subr.bf16.mxu0 0
        %1444 = vmatpush1.bf16.msra.mxu0 %v1441
        %1445 = vmatprep.subr.bf16.mxu0 0
        %1446 = vmatpush1.bf16.msra.mxu0 0
        %1447 = vmatprep.subr.bf16.mxu0 0
        %1448 = vmatpush1.bf16.msra.mxu0 0
        %1449 = vmatprep.subr.bf16.mxu0 0
        %1450 = vmatpush1.bf16.msra.mxu0 0
        %1451 = vmatprep.subr.bf16.mxu0 0
        %1452 = vmatpush1.bf16.msra.mxu0 0
        %1453 = vmatprep.subr.bf16.mxu0 0
        %1454 = vmatpush1.bf16.msra.mxu0 0
        %1455 = vmatprep.subr.bf16.mxu0 0
        %1456 = vmatpush1.bf16.msra.mxu0 0
        %1457 = vmatprep.subr.bf16.mxu0 0
        %1458 = vmatpush1.bf16.msra.mxu0 0
        %1459 = vmatprep.subr.bf16.mxu0 0
        %1460 = vmatpush1.bf16.msra.mxu0 0
        %1461 = vmatprep.subr.bf16.mxu0 0
        %1462 = vmatpush1.bf16.msra.mxu0 0
        %1463 = vmatprep.subr.bf16.mxu0 0
        %1464 = vmatpush1.bf16.msra.mxu0 0
        %1465 = vmatprep.subr.bf16.mxu0 0
        %1466 = vmatpush1.bf16.msra.mxu0 0
        %1467 = vmatprep.subr.bf16.mxu0 0
        %1468 = vmatpush1.bf16.msra.mxu0 0
        %1469 = vmatprep.subr.bf16.mxu0 0
        %1470 = vmatpush1.bf16.msra.mxu0 0
        %1471 = vmatprep.subr.bf16.mxu0 0
        %1472 = vmatpush1.bf16.msra.mxu0 0
        %1473 = vmatprep.subr.bf16.mxu0 0
        %1474 = vmatpush1.bf16.msra.mxu0 0
        %1475 = vmatprep.mubr.bf16.mxu0 0
        %1476 = vmatmul.mubr.bf16.gmra.mrb[0].mxu0 %v1438
        %v1477 = vpop.f32.mrb[0].mxu0
        %v1478 = vadd.f32 0.0, %v1477
        %v1479 = vpop.f32.mrb[0].mxu0
        %v1480 = vpop.f32.mrb[0].mxu0
        %v1481 = vpop.f32.mrb[0].mxu0
        %1482 = vdwg.mxu0
        %v1483 = vld [vmem:[#allocation2] sm:$0xff]
        %v1484 = vpack.c.bf16 %v1478, %v1478
        %s1485 = scalar_lea.vmem %s7, 12
        %v1486 = vld [vmem:[%s1485] sm:$0xf]
        %v1488 = vsel %vm521, %v1484, 0
        %v1491 = vsel %vm585, %v1486, 0
        %1493 = vmatprep.subr.bf16.mxu0 0
        %1494 = vmatpush1.bf16.msra.mxu0 %v1491
        %1495 = vmatprep.subr.bf16.mxu0 0
        %1496 = vmatpush1.bf16.msra.mxu0 0
        %1497 = vmatprep.subr.bf16.mxu0 0
        %1498 = vmatpush1.bf16.msra.mxu0 0
        %1499 = vmatprep.subr.bf16.mxu0 0
        %1500 = vmatpush1.bf16.msra.mxu0 0
        %1501 = vmatprep.subr.bf16.mxu0 0
        %1502 = vmatpush1.bf16.msra.mxu0 0
        %1503 = vmatprep.subr.bf16.mxu0 0
        %1504 = vmatpush1.bf16.msra.mxu0 0
        %1505 = vmatprep.subr.bf16.mxu0 0
        %1506 = vmatpush1.bf16.msra.mxu0 0
        %1507 = vmatprep.subr.bf16.mxu0 0
        %1508 = vmatpush1.bf16.msra.mxu0 0
        %1509 = vmatprep.subr.bf16.mxu0 0
        %1510 = vmatpush1.bf16.msra.mxu0 0
        %1511 = vmatprep.subr.bf16.mxu0 0
        %1512 = vmatpush1.bf16.msra.mxu0 0
        %1513 = vmatprep.subr.bf16.mxu0 0
        %1514 = vmatpush1.bf16.msra.mxu0 0
        %1515 = vmatprep.subr.bf16.mxu0 0
        %1516 = vmatpush1.bf16.msra.mxu0 0
        %1517 = vmatprep.subr.bf16.mxu0 0
        %1518 = vmatpush1.bf16.msra.mxu0 0
        %1519 = vmatprep.subr.bf16.mxu0 0
        %1520 = vmatpush1.bf16.msra.mxu0 0
        %1521 = vmatprep.subr.bf16.mxu0 0
        %1522 = vmatpush1.bf16.msra.mxu0 0
        %1523 = vmatprep.subr.bf16.mxu0 0
        %1524 = vmatpush1.bf16.msra.mxu0 0
        %1525 = vmatprep.mubr.bf16.mxu0 0
        %1526 = vmatmul.mubr.bf16.gmra.mrb[0].mxu0 %v1488
        %v1527 = vpop.f32.mrb[0].mxu0
        %v1528 = vadd.f32 0.0, %v1527
        %v1529 = vpop.f32.mrb[0].mxu0
        %v1530 = vpop.f32.mrb[0].mxu0
        %v1531 = vpop.f32.mrb[0].mxu0
        %1532 = vdwg.mxu0
        %v1533 = vadd.f32 %v1483, %v1528
        %1534 = vst.msk [vmem:[#allocation2] sm:$0xff] %vm361, %v1533
        %v1535 = vld [vmem:[#allocation2] sm:$0xff]
        %v1536 = vlaneseq
        %v1537 = vshrl.u32 %v1536, 7
        %v1538 = vsub.s32 0, %v1537
        %v1539 = vrot.slane %v358, %v1538
        %v1540 = vadd.f32 %v1535, %v1539
        %v1541 = vadd.f32 %v356, %v1540
        %v1542 = vadd.f32 %v1541, %v1540
        %v1543 = vsel %vm361, %v1542, 0.0
        %1544 = vadd.xlane.f32.xlu0 %v1543
        %v1545 = vpop.xlane.xlu0 %1544
        %v1546 = vmul.f32 %v1545, %v365
        %v1547 = vsub.f32 %v1542, %v1546
        %v1548 = vmul.f32 %v1547, %v1547
        %v1549 = vsel %vm361, %v1548, 0.0
        %1550 = vadd.xlane.f32.xlu0 %v1549
        %v1551 = vpop.xlane.xlu0 %1550
        %v1552 = vmul.f32 %v1551, %v365
        %v1553 = vadd.f32 %v1552, 1e-05
        %v1554 = vrsqrt.pop %v1553
        %v1555 = vmul.f32 %v1547, %v1554
        %v1556 = vlaneseq
        %v1557 = vshrl.u32 %v1556, 7
        %v1558 = vsub.s32 2, %v1557
        %v1559 = vrot.slane %v357, %v1558
        %v1560 = vmul.f32 %v1555, %v1559
        %v1561 = vlaneseq
        %v1562 = vshrl.u32 %v1561, 7
        %v1563 = vsub.s32 3, %v1562
        %v1564 = vrot.slane %v357, %v1563
        %v1565 = vadd.f32 %v1560, %v1564
        %v1566 = vpack.c.bf16 %v1565, %v1565
        %v1567 = vld [vmem:[%s8] sm:$0xf]
        %v1568 = vld [vmem:[%s8 + $0x4] sm:$0xf]
        %v1569 = vld [vmem:[%s8 + $0x8] sm:$0xf]
        %v1570 = vld [vmem:[%s8 + $0xc] sm:$0xf]
        %v1571 = vlaneseq
        %v1572 = vshrl.u32 %v1571, 7
        %v1573 = vsub.s32 1, %v1572
        %v1574 = vrot.slane %v358, %v1573
        %v1579 = vunpack.c.l.b16 %v1567
        %v1580 = vunpack.c.l.b16 %v1568
        %v1581 = vunpack.c.l.b16 %v1569
        %v1582 = vunpack.c.l.b16 %v1570
        %v1583 = vpack.c.b16 %v1580, %v1579
        %v1584 = vpack.c.b16 %v1582, %v1581
        %v1588 = vsel %vm361, %v1566, 0
        %1590 = vmatprep.subr.bf16.mxu0 0
        %1591 = vmatpush1.bf16.msra.mxu0 %v1583
        %1592 = vmatprep.subr.bf16.mxu0 0
        %1593 = vmatpush1.bf16.msra.mxu0 %v1584
        %1594 = vmatprep.subr.bf16.mxu0 0
        %1595 = vmatpush1.bf16.msra.mxu0 0
        %1596 = vmatprep.subr.bf16.mxu0 0
        %1597 = vmatpush1.bf16.msra.mxu0 0
        %1598 = vmatprep.subr.bf16.mxu0 0
        %1599 = vmatpush1.bf16.msra.mxu0 0
        %1600 = vmatprep.subr.bf16.mxu0 0
        %1601 = vmatpush1.bf16.msra.mxu0 0
        %1602 = vmatprep.subr.bf16.mxu0 0
        %1603 = vmatpush1.bf16.msra.mxu0 0
        %1604 = vmatprep.subr.bf16.mxu0 0
        %1605 = vmatpush1.bf16.msra.mxu0 0
        %1606 = vmatprep.subr.bf16.mxu0 0
        %1607 = vmatpush1.bf16.msra.mxu0 0
        %1608 = vmatprep.subr.bf16.mxu0 0
        %1609 = vmatpush1.bf16.msra.mxu0 0
        %1610 = vmatprep.subr.bf16.mxu0 0
        %1611 = vmatpush1.bf16.msra.mxu0 0
        %1612 = vmatprep.subr.bf16.mxu0 0
        %1613 = vmatpush1.bf16.msra.mxu0 0
        %1614 = vmatprep.subr.bf16.mxu0 0
        %1615 = vmatpush1.bf16.msra.mxu0 0
        %1616 = vmatprep.subr.bf16.mxu0 0
        %1617 = vmatpush1.bf16.msra.mxu0 0
        %1618 = vmatprep.subr.bf16.mxu0 0
        %1619 = vmatpush1.bf16.msra.mxu0 0
        %1620 = vmatprep.subr.bf16.mxu0 0
        %1621 = vmatpush1.bf16.msra.mxu0 0
        %1622 = vmatprep.mubr.bf16.mxu0 0
        %1623 = vmatmul.mubr.bf16.gmra.mrb[0].mxu0 %v1588
        %v1624 = vpop.f32.mrb[0].mxu0
        %v1625 = vadd.f32 %v1574, %v1624
        %v1626 = vpop.f32.mrb[0].mxu0
        %v1627 = vpop.f32.mrb[0].mxu0
        %v1628 = vpop.f32.mrb[0].mxu0
        %1629 = vdwg.mxu0
        %v1630 = vmul.f32 %v1625, 0.5
        %v1631 = vmul.f32 %v1625, 0.70710677
        %v1632 = vand.u32 2147483647, %v1631
        %v1633 = vmul.f32 %v1632, 0.3275911
        %v1634 = vadd.f32 %v1633, 1.0
        %v1635 = vrcp.pop %v1634
        %v1636 = vmul.f32 %v1635, 1.0614054
        %v1637 = vadd.f32 %v1636, -1.4531521
        %v1638 = vmul.f32 %v1637, %v1635
        %v1639 = vadd.f32 %v1638, 1.4214138
        %v1640 = vmul.f32 %v1639, %v1635
        %v1641 = vadd.f32 %v1640, -0.28449672
        %v1642 = vmul.f32 %v1641, %v1635
        %v1643 = vadd.f32 %v1642, 0.2548296
        %v1644 = vmul.f32 %v1643, %v1635
        %v1645 = vsub.f32 0.0, %v1632
        %v1646 = vmul.f32 %v1645, %v1632
        %v1647 = vmul.f32 %v1646, 1.442695
        %v1648 = vpow.pop %v1647
        %v1649 = vmul.f32 %v1644, %v1648
        %v1650 = vsub.f32 1.0, %v1649
        %vm1651 = vcmp.lt.f32.partialorder %v1631, 0.0
        %v1652 = vsub.f32 0.0, %v1650
        %v1653 = vsel %vm1651, %v1652, %v1650
        %v1654 = vadd.f32 %v1653, 1.0
        %v1655 = vmul.f32 %v1630, %v1654
        %v1656 = vpack.c.bf16 %v1655, %v1655
        %v1657 = vld [vmem:[%s9] sm:$0xf]
        %v1658 = vld [vmem:[%s9 + $0x4] sm:$0xf]
        %v1659 = vld [vmem:[%s9 + $0x8] sm:$0xf]
        %v1660 = vld [vmem:[%s9 + $0xc] sm:$0xf]
        %v1661 = vld [vmem:[%s9 + $0x10] sm:$0xf]
        %v1662 = vld [vmem:[%s9 + $0x14] sm:$0xf]
        %v1663 = vld [vmem:[%s9 + $0x18] sm:$0xf]
        %v1664 = vld [vmem:[%s9 + $0x1c] sm:$0xf]
        %v1665 = vld [vmem:[%s9 + $0x20] sm:$0xf]
        %v1666 = vld [vmem:[%s9 + $0x24] sm:$0xf]
        %v1667 = vld [vmem:[%s9 + $0x28] sm:$0xf]
        %v1668 = vld [vmem:[%s9 + $0x2c] sm:$0xf]
        %v1669 = vld [vmem:[%s9 + $0x30] sm:$0xf]
        %v1670 = vld [vmem:[%s9 + $0x34] sm:$0xf]
        %v1671 = vld [vmem:[%s9 + $0x38] sm:$0xf]
        %v1672 = vld [vmem:[%s9 + $0x3c] sm:$0xf]
        %v1673 = vlaneseq
        %v1674 = vshrl.u32 %v1673, 7
        %v1675 = vsub.s32 2, %v1674
        %v1676 = vrot.slane %v358, %v1675
        %v1693 = vunpack.c.l.b16 %v1657
        %v1694 = vunpack.c.l.b16 %v1658
        %v1695 = vunpack.c.l.b16 %v1659
        %v1696 = vunpack.c.l.b16 %v1660
        %v1697 = vunpack.c.l.b16 %v1661
        %v1698 = vunpack.c.l.b16 %v1662
        %v1699 = vunpack.c.l.b16 %v1663
        %v1700 = vunpack.c.l.b16 %v1664
        %v1701 = vunpack.c.l.b16 %v1665
        %v1702 = vunpack.c.l.b16 %v1666
        %v1703 = vunpack.c.l.b16 %v1667
        %v1704 = vunpack.c.l.b16 %v1668
        %v1705 = vunpack.c.l.b16 %v1669
        %v1706 = vunpack.c.l.b16 %v1670
        %v1707 = vunpack.c.l.b16 %v1671
        %v1708 = vunpack.c.l.b16 %v1672
        %v1709 = vpack.c.b16 %v1694, %v1693
        %v1710 = vpack.c.b16 %v1696, %v1695
        %v1711 = vpack.c.b16 %v1698, %v1697
        %v1712 = vpack.c.b16 %v1700, %v1699
        %v1713 = vpack.c.b16 %v1702, %v1701
        %v1714 = vpack.c.b16 %v1704, %v1703
        %v1715 = vpack.c.b16 %v1706, %v1705
        %v1716 = vpack.c.b16 %v1708, %v1707
        %1725 = vmatprep.subr.bf16.mxu0 0
        %1726 = vmatpush1.bf16.msra.mxu0 %v1709
        %1727 = vmatprep.subr.bf16.mxu0 0
        %1728 = vmatpush1.bf16.msra.mxu0 %v1710
        %1729 = vmatprep.subr.bf16.mxu0 0
        %1730 = vmatpush1.bf16.msra.mxu0 %v1711
        %1731 = vmatprep.subr.bf16.mxu0 0
        %1732 = vmatpush1.bf16.msra.mxu0 %v1712
        %1733 = vmatprep.subr.bf16.mxu0 0
        %1734 = vmatpush1.bf16.msra.mxu0 %v1713
        %1735 = vmatprep.subr.bf16.mxu0 0
        %1736 = vmatpush1.bf16.msra.mxu0 %v1714
        %1737 = vmatprep.subr.bf16.mxu0 0
        %1738 = vmatpush1.bf16.msra.mxu0 %v1715
        %1739 = vmatprep.subr.bf16.mxu0 0
        %1740 = vmatpush1.bf16.msra.mxu0 %v1716
        %1741 = vmatprep.subr.bf16.mxu0 0
        %1742 = vmatpush1.bf16.msra.mxu0 0
        %1743 = vmatprep.subr.bf16.mxu0 0
        %1744 = vmatpush1.bf16.msra.mxu0 0
        %1745 = vmatprep.subr.bf16.mxu0 0
        %1746 = vmatpush1.bf16.msra.mxu0 0
        %1747 = vmatprep.subr.bf16.mxu0 0
        %1748 = vmatpush1.bf16.msra.mxu0 0
        %1749 = vmatprep.subr.bf16.mxu0 0
        %1750 = vmatpush1.bf16.msra.mxu0 0
        %1751 = vmatprep.subr.bf16.mxu0 0
        %1752 = vmatpush1.bf16.msra.mxu0 0
        %1753 = vmatprep.subr.bf16.mxu0 0
        %1754 = vmatpush1.bf16.msra.mxu0 0
        %1755 = vmatprep.subr.bf16.mxu0 0
        %1756 = vmatpush1.bf16.msra.mxu0 0
        %1757 = vmatprep.mubr.bf16.mxu0 0
        %1758 = vmatmul.mubr.bf16.gmra.mrb[0].mxu0 %v1656
        %v1759 = vpop.f32.mrb[0].mxu0
        %v1760 = vadd.f32 %v1676, %v1759
        %v1761 = vpop.f32.mrb[0].mxu0
        %v1762 = vpop.f32.mrb[0].mxu0
        %v1763 = vpop.f32.mrb[0].mxu0
        %1764 = vdwg.mxu0
        %v1765 = vadd.f32 %v1541, %v1760
        %1766 = vst.msk [vmem:[%s350] sm:$0xff] %vm361, %v1765
        %s1767 = sand.u32 %s247, 1
        %s1768 = scalar_lea.sflag [#allocation4], %s1767
        %s1769 = sand.u32 %s247, 1
        %s1770 = smul.addr %s1769, 8
        %s1771 = scalar_lea.vmem [#allocation3], %s1770
        // Predicated region
        $region61: #{tpu_custom_call.1} parent=59 // pred_check
          %p1772 = pneg %p257
        $region62: #{tpu_custom_call.1} parent=59 // pred_check_branch
          %1774 = sbr.rel (%p1772) target = $region64
        $region63: #{tpu_custom_call.1} parent=59 // pred_region
          %s1776 = ssub.s32 128, 128
          %1777 = vsyncadd %s1768, %s1776
          %s1778 = smul.addr %s24, 128
          %s1779 = scalar_lea.hbm %s10, %s1778
          %s1781 = sshll.u32 %s1771, 4
          %s1782 = int_to_ptr.vmem [resolvable:$true] %s1781
          %1784 = dma.vmem_to_hbm [thread:$0]  %s1782, 128, %s1779, %s1768
        $region64: #{tpu_custom_call.1} parent=59 // pred_fallthru
          _
      $region60: #{tpu_custom_call.1} parent=5 // pred_fallthru
        _
      %p1785 = scmp.le.s32.totalorder 2, %s19
      // Predicated region
      $region65: #{tpu_custom_call.1} parent=5 // pred_check
        %p1786 = pneg %p1785
      $region66: #{tpu_custom_call.1} parent=5 // pred_check_branch
        %1788 = sbr.rel (%p1786) target = $region68
      $region67: #{tpu_custom_call.1} parent=5 // pred_region
        %s1789 = ssub.s32 %s19, 2
        // Predicated region
        $region69: #{tpu_custom_call.1} parent=67 // pred_check
          %p1790 = pneg %p263
        $region70: #{tpu_custom_call.1} parent=67 // pred_check_branch
          %1792 = sbr.rel (%p1790) target = $region72
        $region71: #{tpu_custom_call.1} parent=67 // pred_region
          %s1793 = sand.u32 %s248, 1
          %s1794 = scalar_lea.sflag [#allocation4], %s1793
          %s1795 = sand.u32 %s248, 1
          %s1796 = smul.addr %s1795, 8
          %s1797 = scalar_lea.vmem [#allocation3], %s1796
          %1798 = dma.done %s1794, 128
        $region72: #{tpu_custom_call.1} parent=67 // pred_fallthru
          _
      $region68: #{tpu_custom_call.1} parent=5 // pred_fallthru
        _
    $region6: #{tpu_custom_call.1} parent=1 // loop_footer
      %s23 = sadd.s32 1, %s19
    $region7: #{tpu_custom_call.1} parent=1 // loop_footer_branch
      %18 = sbr.rel target = $region3
    $region8: #{tpu_custom_call.1} parent=1 // loop_exit
      _
    %1799 = vsyncpa [#allocation4], 1
    %s1800 = scalar_lea.sflag [#allocation4], 1
    %1801 = vsyncpa %s1800, 1

</llo_original>
